<compile_context>
chip_gen: v7x
topology: tpu7x:2x2x1
jax: 0.10.0
libtpu: 0.0.40
codegen_flags: <defaults>
</compile_context>

<pallas_src>
import math

import jax
import jax.numpy as jnp
from jax import lax
from jax.experimental import pallas as pl
from jax.experimental.pallas import tpu as pltpu

BN_EPS = 1e-5


# ---------------------------------------------------------------------------
# In-kernel helpers
# ---------------------------------------------------------------------------
def _maxpool2x2(ref):
    """2x2 / stride-2 max pool read directly from a VMEM ref."""
    n, h, w, c = ref.shape
    ho, wo = h // 2, w // 2
    x00 = ref[:, pl.ds(0, ho, 2), pl.ds(0, wo, 2), :]
    x01 = ref[:, pl.ds(0, ho, 2), pl.ds(1, wo, 2), :]
    x10 = ref[:, pl.ds(1, ho, 2), pl.ds(0, wo, 2), :]
    x11 = ref[:, pl.ds(1, ho, 2), pl.ds(1, wo, 2), :]
    return jnp.maximum(jnp.maximum(x00, x01), jnp.maximum(x10, x11))


def _store_padded(pad_ref, interior):
    """Write `interior` into pad_ref[:, 1:-1, 1:-1, :]; zero only the 1-px halo."""
    n, hp, wp, c = pad_ref.shape
    h, w = hp - 2, wp - 2
    zrow = jnp.zeros((n, 1, wp, c), pad_ref.dtype)
    zcol = jnp.zeros((n, hp, 1, c), pad_ref.dtype)
    pad_ref[:, 0:1, :, :] = zrow
    pad_ref[:, hp - 1:hp, :, :] = zrow
    pad_ref[:, :, 0:1, :] = zcol
    pad_ref[:, :, wp - 1:wp, :] = zcol
    pad_ref[:, 1:h + 1, 1:w + 1, :] = interior.astype(pad_ref.dtype)


def _im2col_3x3(pad_ref, h, w):
    """Gather the 9 conv taps and concatenate along the lane axis into one
    (n*h*w, 9*c) bf16 MXU operand — no scratch buffer, no thin masked stores."""
    n = pad_ref.shape[0]
    c = pad_ref.shape[3]
    rows = n * h * w
    taps = []
    for ky in range(3):
        for kx in range(3):
            taps.append(pad_ref[:, ky:ky + h, kx:kx + w, :].reshape(rows, c))
    return jnp.concatenate(taps, axis=-1).astype(jnp.bfloat16)


def _conv_relu_bn(im_bf16, w_ref, b_ref, g_ref, be_ref):
    """Single im2col matmul (bf16 MXU, f32 acc) + bias + ReLU + training-mode BN
    with one-pass sum / sum-of-squares statistics."""
    acc = jnp.dot(im_bf16, w_ref[...], preferred_element_type=jnp.float32)
    acc = jnp.maximum(acc + b_ref[...], 0.0)                    # bias + ReLU (f32)
    inv_rows = 1.0 / acc.shape[0]
    s1 = jnp.sum(acc, axis=0, keepdims=True)
    s2 = jnp.sum(acc * acc, axis=0, keepdims=True)
    mean = s1 * inv_rows
    var = jnp.maximum(s2 * inv_rows - mean * mean, 0.0)         # biased, clamped
    return (acc - mean) * lax.rsqrt(var + BN_EPS) * g_ref[...] + be_ref[...]


# ---------------------------------------------------------------------------
# Fused kernel: pool->conv->relu->bn  x2  -> flatten -> fc -> relu -> fc
# ---------------------------------------------------------------------------
def _encoder_kernel(x_ref, w1_ref, b1_ref, g1_ref, be1_ref,
                    w2_ref, b2_ref, g2_ref, be2_ref,
                    wfc1_ref, bfc1_ref, wfc2_ref, bfc2_ref,
                    o_ref,
                    pad1_ref, c1_ref, pad2_ref):
    n, h, w, cin = x_ref.shape
    c1 = w1_ref.shape[-1]
    c2 = w2_ref.shape[-1]
    h1, w1s = h // 2, w // 2
    h2, w2s = h // 4, w // 4

    # ---- stage 1: MaxPool2d(2) -> Conv3x3 (im2col matmul) -> ReLU -> BN ----
    _store_padded(pad1_ref, _maxpool2x2(x_ref))
    im1 = _im2col_3x3(pad1_ref, h1, w1s)                         # (n*h1*w1, 9*cin)
    y1 = _conv_relu_bn(im1, w1_ref, b1_ref, g1_ref, be1_ref)     # (n*h1*w1, c1) f32
    c1_ref[...] = y1.reshape(n, h1, w1s, c1)

    # ---- stage 2: MaxPool2d(2) -> Conv3x3 (im2col matmul) -> ReLU -> BN ----
    _store_padded(pad2_ref, _maxpool2x2(c1_ref))
    im2 = _im2col_3x3(pad2_ref, h2, w2s)                         # (n*h2*w2, 9*c1)
    y2 = _conv_relu_bn(im2, w2_ref, b2_ref, g2_ref, be2_ref)     # (n*h2*w2, c2) f32

    # ---- flatten in NHWC order (FC1 weight rows were permuted to match) ----
    # Lane-axis concat of per-pixel slices: no scratch buffer, no masked stores.
    y2_4d = y2.reshape(n, h2, w2s, c2)
    flat = jnp.concatenate(
        [y2_4d[:, yy, xx, :] for yy in range(h2) for xx in range(w2s)],
        axis=-1).astype(jnp.bfloat16)                            # (n, fc_in)

    # ---- Linear -> ReLU -> Linear (lane-padded to 128-wide outputs) ----
    hfc = jnp.dot(flat, wfc1_ref[...], preferred_element_type=jnp.float32)
    hfc = jnp.maximum(hfc + bfc1_ref[...], 0.0)
    o_ref[...] = (jnp.dot(hfc.astype(jnp.bfloat16), wfc2_ref[...],
                          preferred_element_type=jnp.float32) + bfc2_ref[...])


# ---------------------------------------------------------------------------
# Wrapper
# ---------------------------------------------------------------------------
def _round_up(v, m):
    return ((v + m - 1) // m) * m


def _full_spec(a):
    nd = a.ndim
    return pl.BlockSpec(a.shape, lambda i, _nd=nd: (0,) * _nd)


def _nbytes(shape, dtype):
    return math.prod(shape) * jnp.dtype(dtype).itemsize


@jax.jit
def encoder_forward(x_nchw, params):
    n, cin, h, w = x_nchw.shape
    c1, c2 = cin // 2, cin // 4
    h1, w1 = h // 2, w // 2
    h2, w2 = h // 4, w // 4
    fc_in = c2 * h2 * w2
    fc_mid = params["wfc1"].shape[-1]
    vec = params["wfc2"].shape[-1]
    fc_mid_p = _round_up(fc_mid, 128)   # lane-dense FC hidden width
    vec_p = _round_up(vec, 128)         # lane-dense output width

    x = jnp.transpose(x_nchw, (0, 2, 3, 1)).astype(jnp.float32)   # NCHW -> NHWC

    # Conv weights as (9*Cin, Cout) bf16 matrices in im2col tap order (ky,kx,ci).
    w1m = params["w1"].reshape(9 * cin, c1).astype(jnp.bfloat16)
    w2m = params["w2"].reshape(9 * c1, c2).astype(jnp.bfloat16)

    # FC1: permute rows from PyTorch NCHW flatten order (c,y,x) to the kernel's
    # NHWC flatten order (y,x,c); zero-pad output columns to 128-lane multiple.
    wfc1r = (params["wfc1"].reshape(c2, h2, w2, fc_mid)
             .transpose(1, 2, 0, 3).reshape(fc_in, fc_mid))
    wfc1p = jnp.pad(wfc1r, ((0, 0), (0, fc_mid_p - fc_mid))).astype(jnp.bfloat16)
    bfc1p = jnp.pad(params["bfc1"], ((0, 0), (0, fc_mid_p - fc_mid)))
    wfc2p = jnp.pad(params["wfc2"],
                    ((0, fc_mid_p - fc_mid), (0, vec_p - vec))).astype(jnp.bfloat16)
    bfc2p = jnp.pad(params["bfc2"], ((0, 0), (0, vec_p - vec)))

    inputs = (x, w1m, params["b1"], params["g1"], params["be1"],
              w2m, params["b2"], params["g2"], params["be2"],
              wfc1p, bfc1p, wfc2p, bfc2p)

    scratch_defs = [
        ((n, h1 + 2, w1 + 2, cin), jnp.float32),   # padded pool-1 (conv-1 input)
        ((n, h1, w1, c1), jnp.float32),            # stage-1 activation (pool source)
        ((n, h2 + 2, w2 + 2, c1), jnp.float32),    # padded pool-2 (conv-2 input)
    ]
    scratch_shapes = [pltpu.VMEM(s, d) for s, d in scratch_defs]

    # VMEM budget from actual footprint (double-buffered I/O + scratch) with
    # headroom for in-register im2col / matmul temporaries; capped well under
    # v7x's 64 MiB physical VMEM.
    scratch_bytes = sum(_nbytes(s, d) for s, d in scratch_defs)
    io_bytes = sum(int(a.size) * a.dtype.itemsize for a in inputs) + n * vec_p * 4
    vmem_limit = int(min(64 << 20, max(32 << 20, 4 * (scratch_bytes + 2 * io_bytes))))

    out = pl.pallas_call(
        _encoder_kernel,
        out_shape=jax.ShapeDtypeStruct((n, vec_p), jnp.float32),
        grid=(1,),
        in_specs=[_full_spec(a) for a in inputs],
        out_specs=pl.BlockSpec((n, vec_p), lambda i: (0, 0)),
        scratch_shapes=scratch_shapes,
        compiler_params=pltpu.CompilerParams(
            dimension_semantics=("arbitrary",),
            vmem_limit_bytes=vmem_limit),
    )(*inputs)
    return out[:, :vec]   # strip lane padding


# ---------------------------------------------------------------------------
# Deterministic parameter init (shapes from Encoder.__init__)
# ---------------------------------------------------------------------------
def init_params(key, in_channels, fc_in, vector_size):
    c1, c2 = in_channels // 2, in_channels // 4
    fc_mid = fc_in // 4
    ks = jax.random.split(key, 8)

    def u(k, shape, fan_in):
        bound = 1.0 / (fan_in ** 0.5)
        return jax.random.uniform(k, shape, jnp.float32, -bound, bound)

    return dict(
        # conv weights stored as (kH, kW, Cin, Cout) to match NHWC kernel layout
        w1=u(ks[0], (3, 3, in_channels, c1), 9 * in_channels),
        b1=u(ks[1], (1, c1), 9 * in_channels),
        g1=jnp.ones((1, c1), jnp.float32),
        be1=jnp.zeros((1, c1), jnp.float32),
        w2=u(ks[2], (3, 3, c1, c2), 9 * c1),
        b2=u(ks[3], (1, c2), 9 * c1),
        g2=jnp.ones((1, c2), jnp.float32),
        be2=jnp.zeros((1, c2), jnp.float32),
        # linear weights stored transposed as (in, out); rows in PyTorch flatten order
        wfc1=u(ks[4], (fc_in, fc_mid), fc_in),
        bfc1=u(ks[5], (1, fc_mid), fc_in),
        wfc2=u(ks[6], (fc_mid, vector_size), fc_mid),
        bfc2=u(ks[7], (1, vector_size), fc_mid),
    )


# ---------------------------------------------------------------------------
# Pure-JAX reference (matmul_dtype=f32 -> exact PyTorch math,
#                     matmul_dtype=bf16 -> mirrors the kernel's MXU precision)
# ---------------------------------------------------------------------------
def ref_encoder(x_nchw, params, matmul_dtype=jnp.float32):
    n = x_nchw.shape[0]
    x = jnp.transpose(x_nchw, (0, 2, 3, 1)).astype(jnp.float32)

    def maxpool(a):
        nn_, hh, ww, cc = a.shape
        return a.reshape(nn_, hh // 2, 2, ww // 2, 2, cc).max(axis=(2, 4))

    def conv_relu_bn(a, wk, b, g, be):
        nn_, hh, ww, cc = a.shape
        co = wk.shape[-1]
        ap = jnp.pad(a, ((0, 0), (1, 1), (1, 1), (0, 0)))
        acc = jnp.zeros((nn_, hh, ww, co), jnp.float32)
        for ky in range(3):
            for kx in range(3):
                acc = acc + jnp.einsum(
                    "nhwc,cf->nhwf",
                    ap[:, ky:ky + hh, kx:kx + ww, :].astype(matmul_dtype),
                    wk[ky, kx].astype(matmul_dtype),
                    preferred_element_type=jnp.float32)
        y = jnp.maximum(acc + b.reshape(1, 1, 1, co), 0.0)
        mean = jnp.mean(y, axis=(0, 1, 2), keepdims=True)
        var = jnp.mean((y - mean) ** 2, axis=(0, 1, 2), keepdims=True)
        return ((y - mean) * lax.rsqrt(var + BN_EPS)
                * g.reshape(1, 1, 1, co) + be.reshape(1, 1, 1, co))

    y = conv_relu_bn(maxpool(x), params["w1"], params["b1"], params["g1"], params["be1"])
    y = conv_relu_bn(maxpool(y), params["w2"], params["b2"], params["g2"], params["be2"])
    flat = jnp.transpose(y, (0, 3, 1, 2)).reshape(n, -1)        # PyTorch NCHW flatten
    hfc = jnp.dot(flat.astype(matmul_dtype), params["wfc1"].astype(matmul_dtype),
                  preferred_element_type=jnp.float32) + params["bfc1"]
    hfc = jnp.maximum(hfc, 0.0)
    return (jnp.dot(hfc.astype(matmul_dtype), params["wfc2"].astype(matmul_dtype),
                    preferred_element_type=jnp.float32) + params["bfc2"])


# ---------------------------------------------------------------------------
if __name__ == "__main__":
    N, IN_CHANNELS, H, W = 2, 8, 16, 16
    FC_IN = (IN_CHANNELS // 4) * (H // 4) * (W // 4)   # 2 * 4 * 4 = 32
    VECTOR_SIZE = 8

    key = jax.random.PRNGKey(0)
    kx, kp = jax.random.split(key)
    x = jax.random.normal(kx, (N, IN_CHANNELS, H, W), jnp.float32)
    params = init_params(kp, IN_CHANNELS, FC_IN, VECTOR_SIZE)

    out = jax.block_until_ready(encoder_forward(x, params))

    # PyTorch forward raises if the encoder produces NaN; check host-side here.
    if bool(jnp.any(jnp.isnan(out))):
        raise Exception("Encoder produces NaN")

    assert out.shape == (N, VECTOR_SIZE)
    # Tight check vs a reference using the same bf16 matmul operands / f32 acc.
    ref_bf16 = ref_encoder(x, params, jnp.bfloat16)
    assert jnp.allclose(out, ref_bf16, rtol=1e-2, atol=1e-2), "mismatch vs bf16 ref"
    # Looser check vs the exact f32 (PyTorch-semantics) reference; slack covers
    # bf16 quantization of the matmul operands through 4 matmul layers.
    ref_f32 = ref_encoder(x, params, jnp.float32)
    assert jnp.allclose(out, ref_f32, rtol=1e-1, atol=1e-1), "mismatch vs f32 ref"

    print("KERNEL_OK")
</pallas_src>

<mosaic_0001>
module attributes {stable_mosaic.version = 11 : i64} {
  func.func @_encoder_kernel(%arg0: i32, %arg1: memref<2x16x16x8xf32, #tpu.memory_space<vmem>>, %arg2: memref<72x4xbf16, #tpu.memory_space<vmem>>, %arg3: memref<1x4xf32, #tpu.memory_space<vmem>>, %arg4: memref<1x4xf32, #tpu.memory_space<vmem>>, %arg5: memref<1x4xf32, #tpu.memory_space<vmem>>, %arg6: memref<36x2xbf16, #tpu.memory_space<vmem>>, %arg7: memref<1x2xf32, #tpu.memory_space<vmem>>, %arg8: memref<1x2xf32, #tpu.memory_space<vmem>>, %arg9: memref<1x2xf32, #tpu.memory_space<vmem>>, %arg10: memref<32x128xbf16, #tpu.memory_space<vmem>>, %arg11: memref<1x128xf32, #tpu.memory_space<vmem>>, %arg12: memref<128x128xbf16, #tpu.memory_space<vmem>>, %arg13: memref<1x128xf32, #tpu.memory_space<vmem>>, %arg14: memref<2x128xf32, #tpu.memory_space<vmem>>, %arg15: memref<2x10x10x8xf32, #tpu.memory_space<vmem>>, %arg16: memref<2x8x8x4xf32, #tpu.memory_space<vmem>>, %arg17: memref<2x6x6x4xf32, #tpu.memory_space<vmem>>) attributes {dimension_semantics = [#tpu.dimension_semantics<arbitrary>], iteration_bounds = array<i64: 1>, scalar_prefetch = 0 : i64, scratch_operands = 3 : i64, tpu.core_type = #tpu.core_type<tc>, window_params = [{pipeline_mode = #tpu.pipeline_mode<synchronous>, transform_indices = @transform_0, window_bounds = array<i64: 2, 16, 16, 8>}, {pipeline_mode = #tpu.pipeline_mode<synchronous>, transform_indices = @transform_1, window_bounds = array<i64: 72, 4>}, {pipeline_mode = #tpu.pipeline_mode<synchronous>, transform_indices = @transform_2, window_bounds = array<i64: 1, 4>}, {pipeline_mode = #tpu.pipeline_mode<synchronous>, transform_indices = @transform_3, window_bounds = array<i64: 1, 4>}, {pipeline_mode = #tpu.pipeline_mode<synchronous>, transform_indices = @transform_4, window_bounds = array<i64: 1, 4>}, {pipeline_mode = #tpu.pipeline_mode<synchronous>, transform_indices = @transform_5, window_bounds = array<i64: 36, 2>}, {pipeline_mode = #tpu.pipeline_mode<synchronous>, transform_indices = @transform_6, window_bounds = array<i64: 1, 2>}, {pipeline_mode = #tpu.pipeline_mode<synchronous>, transform_indices = @transform_7, window_bounds = array<i64: 1, 2>}, {pipeline_mode = #tpu.pipeline_mode<synchronous>, transform_indices = @transform_8, window_bounds = array<i64: 1, 2>}, {pipeline_mode = #tpu.pipeline_mode<synchronous>, transform_indices = @transform_9, window_bounds = array<i64: 32, 128>}, {pipeline_mode = #tpu.pipeline_mode<synchronous>, transform_indices = @transform_10, window_bounds = array<i64: 1, 128>}, {pipeline_mode = #tpu.pipeline_mode<synchronous>, transform_indices = @transform_11, window_bounds = array<i64: 128, 128>}, {pipeline_mode = #tpu.pipeline_mode<synchronous>, transform_indices = @transform_12, window_bounds = array<i64: 1, 128>}, {pipeline_mode = #tpu.pipeline_mode<synchronous>, transform_indices = @transform_13, window_bounds = array<i64: 2, 128>}]} {
    %c0 = arith.constant 0 : index
    %c0_0 = arith.constant 0 : index
    %c0_1 = arith.constant 0 : index
    %c0_2 = arith.constant 0 : index
    %0 = tpu.strided_load %arg1[%c0, %c0_0, %c0_1, %c0_2] {strides = array<i32: 1, 2, 2, 1>} : memref<2x16x16x8xf32, #tpu.memory_space<vmem>>, vector<2x8x8x8xf32>
    %c0_3 = arith.constant 0 : index
    %c0_4 = arith.constant 0 : index
    %c1 = arith.constant 1 : index
    %c0_5 = arith.constant 0 : index
    %1 = tpu.strided_load %arg1[%c0_3, %c0_4, %c1, %c0_5] {strides = array<i32: 1, 2, 2, 1>} : memref<2x16x16x8xf32, #tpu.memory_space<vmem>>, vector<2x8x8x8xf32>
    %c0_6 = arith.constant 0 : index
    %c1_7 = arith.constant 1 : index
    %c0_8 = arith.constant 0 : index
    %c0_9 = arith.constant 0 : index
    %2 = tpu.strided_load %arg1[%c0_6, %c1_7, %c0_8, %c0_9] {strides = array<i32: 1, 2, 2, 1>} : memref<2x16x16x8xf32, #tpu.memory_space<vmem>>, vector<2x8x8x8xf32>
    %c0_10 = arith.constant 0 : index
    %c1_11 = arith.constant 1 : index
    %c1_12 = arith.constant 1 : index
    %c0_13 = arith.constant 0 : index
    %3 = tpu.strided_load %arg1[%c0_10, %c1_11, %c1_12, %c0_13] {strides = array<i32: 1, 2, 2, 1>} : memref<2x16x16x8xf32, #tpu.memory_space<vmem>>, vector<2x8x8x8xf32>
    %4 = arith.maximumf %0, %1 : vector<2x8x8x8xf32>
    %5 = arith.maximumf %2, %3 : vector<2x8x8x8xf32>
    %6 = arith.maximumf %4, %5 : vector<2x8x8x8xf32>
    %cst = arith.constant 0.000000e+00 : f32
    %7 = vector.broadcast %cst : f32 to vector<2x1x10x8xf32>
    %cst_14 = arith.constant 0.000000e+00 : f32
    %8 = vector.broadcast %cst_14 : f32 to vector<2x10x1x8xf32>
    %c0_15 = arith.constant 0 : index
    %c0_16 = arith.constant 0 : index
    %c0_17 = arith.constant 0 : index
    %c0_18 = arith.constant 0 : index
    %9 = vector.load %arg15[%c0_15, %c0_16, %c0_17, %c0_18] : memref<2x10x10x8xf32, #tpu.memory_space<vmem>>, vector<2x1x10x8xf32>
    tpu.vector_store %arg15[%c0_15, %c0_16, %c0_17, %c0_18], %7 {strides = array<i32>} : memref<2x10x10x8xf32, #tpu.memory_space<vmem>>, vector<2x1x10x8xf32>,
    %c0_19 = arith.constant 0 : index
    %c9 = arith.constant 9 : index
    %c0_20 = arith.constant 0 : index
    %c0_21 = arith.constant 0 : index
    %10 = vector.load %arg15[%c0_19, %c9, %c0_20, %c0_21] : memref<2x10x10x8xf32, #tpu.memory_space<vmem>>, vector<2x1x10x8xf32>
    tpu.vector_store %arg15[%c0_19, %c9, %c0_20, %c0_21], %7 {strides = array<i32>} : memref<2x10x10x8xf32, #tpu.memory_space<vmem>>, vector<2x1x10x8xf32>,
    %c0_22 = arith.constant 0 : index
    %c0_23 = arith.constant 0 : index
    %c0_24 = arith.constant 0 : index
    %c0_25 = arith.constant 0 : index
    %11 = vector.load %arg15[%c0_22, %c0_23, %c0_24, %c0_25] : memref<2x10x10x8xf32, #tpu.memory_space<vmem>>, vector<2x10x1x8xf32>
    tpu.vector_store %arg15[%c0_22, %c0_23, %c0_24, %c0_25], %8 {strides = array<i32>} : memref<2x10x10x8xf32, #tpu.memory_space<vmem>>, vector<2x10x1x8xf32>,
    %c0_26 = arith.constant 0 : index
    %c0_27 = arith.constant 0 : index
    %c9_28 = arith.constant 9 : index
    %c0_29 = arith.constant 0 : index
    %12 = vector.load %arg15[%c0_26, %c0_27, %c9_28, %c0_29] : memref<2x10x10x8xf32, #tpu.memory_space<vmem>>, vector<2x10x1x8xf32>
    tpu.vector_store %arg15[%c0_26, %c0_27, %c9_28, %c0_29], %8 {strides = array<i32>} : memref<2x10x10x8xf32, #tpu.memory_space<vmem>>, vector<2x10x1x8xf32>,
    %c0_30 = arith.constant 0 : index
    %c1_31 = arith.constant 1 : index
    %c1_32 = arith.constant 1 : index
    %c0_33 = arith.constant 0 : index
    %13 = vector.load %arg15[%c0_30, %c1_31, %c1_32, %c0_33] : memref<2x10x10x8xf32, #tpu.memory_space<vmem>>, vector<2x8x8x8xf32>
    tpu.vector_store %arg15[%c0_30, %c1_31, %c1_32, %c0_33], %6 {strides = array<i32>} : memref<2x10x10x8xf32, #tpu.memory_space<vmem>>, vector<2x8x8x8xf32>,
    %c0_34 = arith.constant 0 : index
    %c0_35 = arith.constant 0 : index
    %c0_36 = arith.constant 0 : index
    %c0_37 = arith.constant 0 : index
    %14 = vector.load %arg15[%c0_34, %c0_35, %c0_36, %c0_37] : memref<2x10x10x8xf32, #tpu.memory_space<vmem>>, vector<2x8x8x8xf32>
    %15 = vector.shape_cast %14 : vector<2x8x8x8xf32> to vector<128x8xf32>
    %c0_38 = arith.constant 0 : index
    %c0_39 = arith.constant 0 : index
    %c1_40 = arith.constant 1 : index
    %c0_41 = arith.constant 0 : index
    %16 = vector.load %arg15[%c0_38, %c0_39, %c1_40, %c0_41] : memref<2x10x10x8xf32, #tpu.memory_space<vmem>>, vector<2x8x8x8xf32>
    %17 = vector.shape_cast %16 : vector<2x8x8x8xf32> to vector<128x8xf32>
    %c0_42 = arith.constant 0 : index
    %c0_43 = arith.constant 0 : index
    %c2 = arith.constant 2 : index
    %c0_44 = arith.constant 0 : index
    %18 = vector.load %arg15[%c0_42, %c0_43, %c2, %c0_44] : memref<2x10x10x8xf32, #tpu.memory_space<vmem>>, vector<2x8x8x8xf32>
    %19 = vector.shape_cast %18 : vector<2x8x8x8xf32> to vector<128x8xf32>
    %c0_45 = arith.constant 0 : index
    %c1_46 = arith.constant 1 : index
    %c0_47 = arith.constant 0 : index
    %c0_48 = arith.constant 0 : index
    %20 = vector.load %arg15[%c0_45, %c1_46, %c0_47, %c0_48] : memref<2x10x10x8xf32, #tpu.memory_space<vmem>>, vector<2x8x8x8xf32>
    %21 = vector.shape_cast %20 : vector<2x8x8x8xf32> to vector<128x8xf32>
    %c0_49 = arith.constant 0 : index
    %c1_50 = arith.constant 1 : index
    %c1_51 = arith.constant 1 : index
    %c0_52 = arith.constant 0 : index
    %22 = vector.load %arg15[%c0_49, %c1_50, %c1_51, %c0_52] : memref<2x10x10x8xf32, #tpu.memory_space<vmem>>, vector<2x8x8x8xf32>
    %23 = vector.shape_cast %22 : vector<2x8x8x8xf32> to vector<128x8xf32>
    %c0_53 = arith.constant 0 : index
    %c1_54 = arith.constant 1 : index
    %c2_55 = arith.constant 2 : index
    %c0_56 = arith.constant 0 : index
    %24 = vector.load %arg15[%c0_53, %c1_54, %c2_55, %c0_56] : memref<2x10x10x8xf32, #tpu.memory_space<vmem>>, vector<2x8x8x8xf32>
    %25 = vector.shape_cast %24 : vector<2x8x8x8xf32> to vector<128x8xf32>
    %c0_57 = arith.constant 0 : index
    %c2_58 = arith.constant 2 : index
    %c0_59 = arith.constant 0 : index
    %c0_60 = arith.constant 0 : index
    %26 = vector.load %arg15[%c0_57, %c2_58, %c0_59, %c0_60] : memref<2x10x10x8xf32, #tpu.memory_space<vmem>>, vector<2x8x8x8xf32>
    %27 = vector.shape_cast %26 : vector<2x8x8x8xf32> to vector<128x8xf32>
    %c0_61 = arith.constant 0 : index
    %c2_62 = arith.constant 2 : index
    %c1_63 = arith.constant 1 : index
    %c0_64 = arith.constant 0 : index
    %28 = vector.load %arg15[%c0_61, %c2_62, %c1_63, %c0_64] : memref<2x10x10x8xf32, #tpu.memory_space<vmem>>, vector<2x8x8x8xf32>
    %29 = vector.shape_cast %28 : vector<2x8x8x8xf32> to vector<128x8xf32>
    %c0_65 = arith.constant 0 : index
    %c2_66 = arith.constant 2 : index
    %c2_67 = arith.constant 2 : index
    %c0_68 = arith.constant 0 : index
    %30 = vector.load %arg15[%c0_65, %c2_66, %c2_67, %c0_68] : memref<2x10x10x8xf32, #tpu.memory_space<vmem>>, vector<2x8x8x8xf32>
    %31 = vector.shape_cast %30 : vector<2x8x8x8xf32> to vector<128x8xf32>
    %32 = tpu.concatenate %15, %17, %19, %21, %23, %25, %27, %29, %31 in 1 : vector<128x8xf32>, vector<128x8xf32>, vector<128x8xf32>, vector<128x8xf32>, vector<128x8xf32>, vector<128x8xf32>, vector<128x8xf32>, vector<128x8xf32>, vector<128x8xf32> -> vector<128x72xf32>
    %33 = arith.truncf %32 : vector<128x72xf32> to vector<128x72xbf16>
    %c0_69 = arith.constant 0 : index
    %c0_70 = arith.constant 0 : index
    %34 = vector.load %arg2[%c0_69, %c0_70] : memref<72x4xbf16, #tpu.memory_space<vmem>>, vector<72x4xbf16>
    %cst_71 = arith.constant dense<0.000000e+00> : vector<128x4xf32>
    %35 = tpu.matmul %33, %34, %cst_71 {dimension_numbers = #tpu.dot_dimension_numbers<[1], [0], [0], [1], [0, 0, 1, 1], [], []>} : vector<128x72xbf16>, vector<72x4xbf16>, vector<128x4xf32> -> vector<128x4xf32>
    %c0_72 = arith.constant 0 : index
    %c0_73 = arith.constant 0 : index
    %36 = vector.load %arg3[%c0_72, %c0_73] : memref<1x4xf32, #tpu.memory_space<vmem>>, vector<1x4xf32>
    %37 = vector.broadcast %36 : vector<1x4xf32> to vector<128x4xf32>
    %38 = arith.addf %35, %37 : vector<128x4xf32>
    %cst_74 = arith.constant 0.000000e+00 : f32
    %39 = vector.broadcast %cst_74 : f32 to vector<128x4xf32>
    %40 = arith.maximumf %38, %39 : vector<128x4xf32>
    %cst_75 = arith.constant dense<0.000000e+00> : vector<4xf32>
    %41 = vector.multi_reduction <add>, %40, %cst_75 [0] : vector<128x4xf32> to vector<4xf32>
    %42 = vector.shape_cast %41 : vector<4xf32> to vector<1x4xf32>
    %43 = arith.mulf %40, %40 : vector<128x4xf32>
    %cst_76 = arith.constant dense<0.000000e+00> : vector<4xf32>
    %44 = vector.multi_reduction <add>, %43, %cst_76 [0] : vector<128x4xf32> to vector<4xf32>
    %45 = vector.shape_cast %44 : vector<4xf32> to vector<1x4xf32>
    %cst_77 = arith.constant 7.812500e-03 : f32
    %46 = vector.broadcast %cst_77 : f32 to vector<1x4xf32>
    %47 = arith.mulf %42, %46 : vector<1x4xf32>
    %cst_78 = arith.constant 7.812500e-03 : f32
    %48 = vector.broadcast %cst_78 : f32 to vector<1x4xf32>
    %49 = arith.mulf %45, %48 : vector<1x4xf32>
    %50 = arith.mulf %47, %47 : vector<1x4xf32>
    %51 = arith.subf %49, %50 : vector<1x4xf32>
    %cst_79 = arith.constant 0.000000e+00 : f32
    %52 = vector.broadcast %cst_79 : f32 to vector<1x4xf32>
    %53 = arith.maximumf %51, %52 : vector<1x4xf32>
    %54 = vector.broadcast %47 : vector<1x4xf32> to vector<128x4xf32>
    %55 = arith.subf %40, %54 : vector<128x4xf32>
    %cst_80 = arith.constant 9.99999974E-6 : f32
    %56 = vector.broadcast %cst_80 : f32 to vector<1x4xf32>
    %57 = arith.addf %53, %56 : vector<1x4xf32>
    %58 = math.rsqrt %57 : vector<1x4xf32>
    %59 = vector.broadcast %58 : vector<1x4xf32> to vector<128x4xf32>
    %60 = arith.mulf %55, %59 : vector<128x4xf32>
    %c0_81 = arith.constant 0 : index
    %c0_82 = arith.constant 0 : index
    %61 = vector.load %arg4[%c0_81, %c0_82] : memref<1x4xf32, #tpu.memory_space<vmem>>, vector<1x4xf32>
    %62 = vector.broadcast %61 : vector<1x4xf32> to vector<128x4xf32>
    %63 = arith.mulf %60, %62 : vector<128x4xf32>
    %c0_83 = arith.constant 0 : index
    %c0_84 = arith.constant 0 : index
    %64 = vector.load %arg5[%c0_83, %c0_84] : memref<1x4xf32, #tpu.memory_space<vmem>>, vector<1x4xf32>
    %65 = vector.broadcast %64 : vector<1x4xf32> to vector<128x4xf32>
    %66 = arith.addf %63, %65 : vector<128x4xf32>
    %67 = vector.shape_cast %66 : vector<128x4xf32> to vector<2x8x8x4xf32>
    %c0_85 = arith.constant 0 : index
    %c0_86 = arith.constant 0 : index
    %c0_87 = arith.constant 0 : index
    %c0_88 = arith.constant 0 : index
    %68 = vector.load %arg16[%c0_85, %c0_86, %c0_87, %c0_88] : memref<2x8x8x4xf32, #tpu.memory_space<vmem>>, vector<2x8x8x4xf32>
    tpu.vector_store %arg16[%c0_85, %c0_86, %c0_87, %c0_88], %67 {strides = array<i32>} : memref<2x8x8x4xf32, #tpu.memory_space<vmem>>, vector<2x8x8x4xf32>,
    %c0_89 = arith.constant 0 : index
    %c0_90 = arith.constant 0 : index
    %c0_91 = arith.constant 0 : index
    %c0_92 = arith.constant 0 : index
    %69 = tpu.strided_load %arg16[%c0_89, %c0_90, %c0_91, %c0_92] {strides = array<i32: 1, 2, 2, 1>} : memref<2x8x8x4xf32, #tpu.memory_space<vmem>>, vector<2x4x4x4xf32>
    %c0_93 = arith.constant 0 : index
    %c0_94 = arith.constant 0 : index
    %c1_95 = arith.constant 1 : index
    %c0_96 = arith.constant 0 : index
    %70 = tpu.strided_load %arg16[%c0_93, %c0_94, %c1_95, %c0_96] {strides = array<i32: 1, 2, 2, 1>} : memref<2x8x8x4xf32, #tpu.memory_space<vmem>>, vector<2x4x4x4xf32>
    %c0_97 = arith.constant 0 : index
    %c1_98 = arith.constant 1 : index
    %c0_99 = arith.constant 0 : index
    %c0_100 = arith.constant 0 : index
    %71 = tpu.strided_load %arg16[%c0_97, %c1_98, %c0_99, %c0_100] {strides = array<i32: 1, 2, 2, 1>} : memref<2x8x8x4xf32, #tpu.memory_space<vmem>>, vector<2x4x4x4xf32>
    %c0_101 = arith.constant 0 : index
    %c1_102 = arith.constant 1 : index
    %c1_103 = arith.constant 1 : index
    %c0_104 = arith.constant 0 : index
    %72 = tpu.strided_load %arg16[%c0_101, %c1_102, %c1_103, %c0_104] {strides = array<i32: 1, 2, 2, 1>} : memref<2x8x8x4xf32, #tpu.memory_space<vmem>>, vector<2x4x4x4xf32>
    %73 = arith.maximumf %69, %70 : vector<2x4x4x4xf32>
    %74 = arith.maximumf %71, %72 : vector<2x4x4x4xf32>
    %75 = arith.maximumf %73, %74 : vector<2x4x4x4xf32>
    %cst_105 = arith.constant 0.000000e+00 : f32
    %76 = vector.broadcast %cst_105 : f32 to vector<2x1x6x4xf32>
    %cst_106 = arith.constant 0.000000e+00 : f32
    %77 = vector.broadcast %cst_106 : f32 to vector<2x6x1x4xf32>
    %c0_107 = arith.constant 0 : index
    %c0_108 = arith.constant 0 : index
    %c0_109 = arith.constant 0 : index
    %c0_110 = arith.constant 0 : index
    %78 = vector.load %arg17[%c0_107, %c0_108, %c0_109, %c0_110] : memref<2x6x6x4xf32, #tpu.memory_space<vmem>>, vector<2x1x6x4xf32>
    tpu.vector_store %arg17[%c0_107, %c0_108, %c0_109, %c0_110], %76 {strides = array<i32>} : memref<2x6x6x4xf32, #tpu.memory_space<vmem>>, vector<2x1x6x4xf32>,
    %c0_111 = arith.constant 0 : index
    %c5 = arith.constant 5 : index
    %c0_112 = arith.constant 0 : index
    %c0_113 = arith.constant 0 : index
    %79 = vector.load %arg17[%c0_111, %c5, %c0_112, %c0_113] : memref<2x6x6x4xf32, #tpu.memory_space<vmem>>, vector<2x1x6x4xf32>
    tpu.vector_store %arg17[%c0_111, %c5, %c0_112, %c0_113], %76 {strides = array<i32>} : memref<2x6x6x4xf32, #tpu.memory_space<vmem>>, vector<2x1x6x4xf32>,
    %c0_114 = arith.constant 0 : index
    %c0_115 = arith.constant 0 : index
    %c0_116 = arith.constant 0 : index
    %c0_117 = arith.constant 0 : index
    %80 = vector.load %arg17[%c0_114, %c0_115, %c0_116, %c0_117] : memref<2x6x6x4xf32, #tpu.memory_space<vmem>>, vector<2x6x1x4xf32>
    tpu.vector_store %arg17[%c0_114, %c0_115, %c0_116, %c0_117], %77 {strides = array<i32>} : memref<2x6x6x4xf32, #tpu.memory_space<vmem>>, vector<2x6x1x4xf32>,
    %c0_118 = arith.constant 0 : index
    %c0_119 = arith.constant 0 : index
    %c5_120 = arith.constant 5 : index
    %c0_121 = arith.constant 0 : index
    %81 = vector.load %arg17[%c0_118, %c0_119, %c5_120, %c0_121] : memref<2x6x6x4xf32, #tpu.memory_space<vmem>>, vector<2x6x1x4xf32>
    tpu.vector_store %arg17[%c0_118, %c0_119, %c5_120, %c0_121], %77 {strides = array<i32>} : memref<2x6x6x4xf32, #tpu.memory_space<vmem>>, vector<2x6x1x4xf32>,
    %c0_122 = arith.constant 0 : index
    %c1_123 = arith.constant 1 : index
    %c1_124 = arith.constant 1 : index
    %c0_125 = arith.constant 0 : index
    %82 = vector.load %arg17[%c0_122, %c1_123, %c1_124, %c0_125] : memref<2x6x6x4xf32, #tpu.memory_space<vmem>>, vector<2x4x4x4xf32>
    tpu.vector_store %arg17[%c0_122, %c1_123, %c1_124, %c0_125], %75 {strides = array<i32>} : memref<2x6x6x4xf32, #tpu.memory_space<vmem>>, vector<2x4x4x4xf32>,
    %c0_126 = arith.constant 0 : index
    %c0_127 = arith.constant 0 : index
    %c0_128 = arith.constant 0 : index
    %c0_129 = arith.constant 0 : index
    %83 = vector.load %arg17[%c0_126, %c0_127, %c0_128, %c0_129] : memref<2x6x6x4xf32, #tpu.memory_space<vmem>>, vector<2x4x4x4xf32>
    %84 = vector.shape_cast %83 : vector<2x4x4x4xf32> to vector<32x4xf32>
    %c0_130 = arith.constant 0 : index
    %c0_131 = arith.constant 0 : index
    %c1_132 = arith.constant 1 : index
    %c0_133 = arith.constant 0 : index
    %85 = vector.load %arg17[%c0_130, %c0_131, %c1_132, %c0_133] : memref<2x6x6x4xf32, #tpu.memory_space<vmem>>, vector<2x4x4x4xf32>
    %86 = vector.shape_cast %85 : vector<2x4x4x4xf32> to vector<32x4xf32>
    %c0_134 = arith.constant 0 : index
    %c0_135 = arith.constant 0 : index
    %c2_136 = arith.constant 2 : index
    %c0_137 = arith.constant 0 : index
    %87 = vector.load %arg17[%c0_134, %c0_135, %c2_136, %c0_137] : memref<2x6x6x4xf32, #tpu.memory_space<vmem>>, vector<2x4x4x4xf32>
    %88 = vector.shape_cast %87 : vector<2x4x4x4xf32> to vector<32x4xf32>
    %c0_138 = arith.constant 0 : index
    %c1_139 = arith.constant 1 : index
    %c0_140 = arith.constant 0 : index
    %c0_141 = arith.constant 0 : index
    %89 = vector.load %arg17[%c0_138, %c1_139, %c0_140, %c0_141] : memref<2x6x6x4xf32, #tpu.memory_space<vmem>>, vector<2x4x4x4xf32>
    %90 = vector.shape_cast %89 : vector<2x4x4x4xf32> to vector<32x4xf32>
    %c0_142 = arith.constant 0 : index
    %c1_143 = arith.constant 1 : index
    %c1_144 = arith.constant 1 : index
    %c0_145 = arith.constant 0 : index
    %91 = vector.load %arg17[%c0_142, %c1_143, %c1_144, %c0_145] : memref<2x6x6x4xf32, #tpu.memory_space<vmem>>, vector<2x4x4x4xf32>
    %92 = vector.shape_cast %91 : vector<2x4x4x4xf32> to vector<32x4xf32>
    %c0_146 = arith.constant 0 : index
    %c1_147 = arith.constant 1 : index
    %c2_148 = arith.constant 2 : index
    %c0_149 = arith.constant 0 : index
    %93 = vector.load %arg17[%c0_146, %c1_147, %c2_148, %c0_149] : memref<2x6x6x4xf32, #tpu.memory_space<vmem>>, vector<2x4x4x4xf32>
    %94 = vector.shape_cast %93 : vector<2x4x4x4xf32> to vector<32x4xf32>
    %c0_150 = arith.constant 0 : index
    %c2_151 = arith.constant 2 : index
    %c0_152 = arith.constant 0 : index
    %c0_153 = arith.constant 0 : index
    %95 = vector.load %arg17[%c0_150, %c2_151, %c0_152, %c0_153] : memref<2x6x6x4xf32, #tpu.memory_space<vmem>>, vector<2x4x4x4xf32>
    %96 = vector.shape_cast %95 : vector<2x4x4x4xf32> to vector<32x4xf32>
    %c0_154 = arith.constant 0 : index
    %c2_155 = arith.constant 2 : index
    %c1_156 = arith.constant 1 : index
    %c0_157 = arith.constant 0 : index
    %97 = vector.load %arg17[%c0_154, %c2_155, %c1_156, %c0_157] : memref<2x6x6x4xf32, #tpu.memory_space<vmem>>, vector<2x4x4x4xf32>
    %98 = vector.shape_cast %97 : vector<2x4x4x4xf32> to vector<32x4xf32>
    %c0_158 = arith.constant 0 : index
    %c2_159 = arith.constant 2 : index
    %c2_160 = arith.constant 2 : index
    %c0_161 = arith.constant 0 : index
    %99 = vector.load %arg17[%c0_158, %c2_159, %c2_160, %c0_161] : memref<2x6x6x4xf32, #tpu.memory_space<vmem>>, vector<2x4x4x4xf32>
    %100 = vector.shape_cast %99 : vector<2x4x4x4xf32> to vector<32x4xf32>
    %101 = tpu.concatenate %84, %86, %88, %90, %92, %94, %96, %98, %100 in 1 : vector<32x4xf32>, vector<32x4xf32>, vector<32x4xf32>, vector<32x4xf32>, vector<32x4xf32>, vector<32x4xf32>, vector<32x4xf32>, vector<32x4xf32>, vector<32x4xf32> -> vector<32x36xf32>
    %102 = arith.truncf %101 : vector<32x36xf32> to vector<32x36xbf16>
    %c0_162 = arith.constant 0 : index
    %c0_163 = arith.constant 0 : index
    %103 = vector.load %arg6[%c0_162, %c0_163] : memref<36x2xbf16, #tpu.memory_space<vmem>>, vector<36x2xbf16>
    %cst_164 = arith.constant dense<0.000000e+00> : vector<32x2xf32>
    %104 = tpu.matmul %102, %103, %cst_164 {dimension_numbers = #tpu.dot_dimension_numbers<[1], [0], [0], [1], [0, 0, 1, 1], [], []>} : vector<32x36xbf16>, vector<36x2xbf16>, vector<32x2xf32> -> vector<32x2xf32>
    %c0_165 = arith.constant 0 : index
    %c0_166 = arith.constant 0 : index
    %105 = vector.load %arg7[%c0_165, %c0_166] : memref<1x2xf32, #tpu.memory_space<vmem>>, vector<1x2xf32>
    %106 = vector.broadcast %105 : vector<1x2xf32> to vector<32x2xf32>
    %107 = arith.addf %104, %106 : vector<32x2xf32>
    %cst_167 = arith.constant 0.000000e+00 : f32
    %108 = vector.broadcast %cst_167 : f32 to vector<32x2xf32>
    %109 = arith.maximumf %107, %108 : vector<32x2xf32>
    %cst_168 = arith.constant dense<0.000000e+00> : vector<2xf32>
    %110 = vector.multi_reduction <add>, %109, %cst_168 [0] : vector<32x2xf32> to vector<2xf32>
    %111 = vector.shape_cast %110 : vector<2xf32> to vector<1x2xf32>
    %112 = arith.mulf %109, %109 : vector<32x2xf32>
    %cst_169 = arith.constant dense<0.000000e+00> : vector<2xf32>
    %113 = vector.multi_reduction <add>, %112, %cst_169 [0] : vector<32x2xf32> to vector<2xf32>
    %114 = vector.shape_cast %113 : vector<2xf32> to vector<1x2xf32>
    %cst_170 = arith.constant 3.125000e-02 : f32
    %115 = vector.broadcast %cst_170 : f32 to vector<1x2xf32>
    %116 = arith.mulf %111, %115 : vector<1x2xf32>
    %cst_171 = arith.constant 3.125000e-02 : f32
    %117 = vector.broadcast %cst_171 : f32 to vector<1x2xf32>
    %118 = arith.mulf %114, %117 : vector<1x2xf32>
    %119 = arith.mulf %116, %116 : vector<1x2xf32>
    %120 = arith.subf %118, %119 : vector<1x2xf32>
    %cst_172 = arith.constant 0.000000e+00 : f32
    %121 = vector.broadcast %cst_172 : f32 to vector<1x2xf32>
    %122 = arith.maximumf %120, %121 : vector<1x2xf32>
    %123 = vector.broadcast %116 : vector<1x2xf32> to vector<32x2xf32>
    %124 = arith.subf %109, %123 : vector<32x2xf32>
    %cst_173 = arith.constant 9.99999974E-6 : f32
    %125 = vector.broadcast %cst_173 : f32 to vector<1x2xf32>
    %126 = arith.addf %122, %125 : vector<1x2xf32>
    %127 = math.rsqrt %126 : vector<1x2xf32>
    %128 = vector.broadcast %127 : vector<1x2xf32> to vector<32x2xf32>
    %129 = arith.mulf %124, %128 : vector<32x2xf32>
    %c0_174 = arith.constant 0 : index
    %c0_175 = arith.constant 0 : index
    %130 = vector.load %arg8[%c0_174, %c0_175] : memref<1x2xf32, #tpu.memory_space<vmem>>, vector<1x2xf32>
    %131 = vector.broadcast %130 : vector<1x2xf32> to vector<32x2xf32>
    %132 = arith.mulf %129, %131 : vector<32x2xf32>
    %c0_176 = arith.constant 0 : index
    %c0_177 = arith.constant 0 : index
    %133 = vector.load %arg9[%c0_176, %c0_177] : memref<1x2xf32, #tpu.memory_space<vmem>>, vector<1x2xf32>
    %134 = vector.broadcast %133 : vector<1x2xf32> to vector<32x2xf32>
    %135 = arith.addf %132, %134 : vector<32x2xf32>
    %136 = vector.shape_cast %135 : vector<32x2xf32> to vector<2x4x4x2xf32>
    %137 = vector.extract_strided_slice %136 {offsets = [0, 0, 0, 0], sizes = [2, 1, 1, 2], strides = [1, 1, 1, 1]} : vector<2x4x4x2xf32> to vector<2x1x1x2xf32>
    %138 = vector.shape_cast %137 : vector<2x1x1x2xf32> to vector<2x2xf32>
    %139 = vector.extract_strided_slice %136 {offsets = [0, 0, 1, 0], sizes = [2, 1, 1, 2], strides = [1, 1, 1, 1]} : vector<2x4x4x2xf32> to vector<2x1x1x2xf32>
    %140 = vector.shape_cast %139 : vector<2x1x1x2xf32> to vector<2x2xf32>
    %141 = vector.extract_strided_slice %136 {offsets = [0, 0, 2, 0], sizes = [2, 1, 1, 2], strides = [1, 1, 1, 1]} : vector<2x4x4x2xf32> to vector<2x1x1x2xf32>
    %142 = vector.shape_cast %141 : vector<2x1x1x2xf32> to vector<2x2xf32>
    %143 = vector.extract_strided_slice %136 {offsets = [0, 0, 3, 0], sizes = [2, 1, 1, 2], strides = [1, 1, 1, 1]} : vector<2x4x4x2xf32> to vector<2x1x1x2xf32>
    %144 = vector.shape_cast %143 : vector<2x1x1x2xf32> to vector<2x2xf32>
    %145 = vector.extract_strided_slice %136 {offsets = [0, 1, 0, 0], sizes = [2, 1, 1, 2], strides = [1, 1, 1, 1]} : vector<2x4x4x2xf32> to vector<2x1x1x2xf32>
    %146 = vector.shape_cast %145 : vector<2x1x1x2xf32> to vector<2x2xf32>
    %147 = vector.extract_strided_slice %136 {offsets = [0, 1, 1, 0], sizes = [2, 1, 1, 2], strides = [1, 1, 1, 1]} : vector<2x4x4x2xf32> to vector<2x1x1x2xf32>
    %148 = vector.shape_cast %147 : vector<2x1x1x2xf32> to vector<2x2xf32>
    %149 = vector.extract_strided_slice %136 {offsets = [0, 1, 2, 0], sizes = [2, 1, 1, 2], strides = [1, 1, 1, 1]} : vector<2x4x4x2xf32> to vector<2x1x1x2xf32>
    %150 = vector.shape_cast %149 : vector<2x1x1x2xf32> to vector<2x2xf32>
    %151 = vector.extract_strided_slice %136 {offsets = [0, 1, 3, 0], sizes = [2, 1, 1, 2], strides = [1, 1, 1, 1]} : vector<2x4x4x2xf32> to vector<2x1x1x2xf32>
    %152 = vector.shape_cast %151 : vector<2x1x1x2xf32> to vector<2x2xf32>
    %153 = vector.extract_strided_slice %136 {offsets = [0, 2, 0, 0], sizes = [2, 1, 1, 2], strides = [1, 1, 1, 1]} : vector<2x4x4x2xf32> to vector<2x1x1x2xf32>
    %154 = vector.shape_cast %153 : vector<2x1x1x2xf32> to vector<2x2xf32>
    %155 = vector.extract_strided_slice %136 {offsets = [0, 2, 1, 0], sizes = [2, 1, 1, 2], strides = [1, 1, 1, 1]} : vector<2x4x4x2xf32> to vector<2x1x1x2xf32>
    %156 = vector.shape_cast %155 : vector<2x1x1x2xf32> to vector<2x2xf32>
    %157 = vector.extract_strided_slice %136 {offsets = [0, 2, 2, 0], sizes = [2, 1, 1, 2], strides = [1, 1, 1, 1]} : vector<2x4x4x2xf32> to vector<2x1x1x2xf32>
    %158 = vector.shape_cast %157 : vector<2x1x1x2xf32> to vector<2x2xf32>
    %159 = vector.extract_strided_slice %136 {offsets = [0, 2, 3, 0], sizes = [2, 1, 1, 2], strides = [1, 1, 1, 1]} : vector<2x4x4x2xf32> to vector<2x1x1x2xf32>
    %160 = vector.shape_cast %159 : vector<2x1x1x2xf32> to vector<2x2xf32>
    %161 = vector.extract_strided_slice %136 {offsets = [0, 3, 0, 0], sizes = [2, 1, 1, 2], strides = [1, 1, 1, 1]} : vector<2x4x4x2xf32> to vector<2x1x1x2xf32>
    %162 = vector.shape_cast %161 : vector<2x1x1x2xf32> to vector<2x2xf32>
    %163 = vector.extract_strided_slice %136 {offsets = [0, 3, 1, 0], sizes = [2, 1, 1, 2], strides = [1, 1, 1, 1]} : vector<2x4x4x2xf32> to vector<2x1x1x2xf32>
    %164 = vector.shape_cast %163 : vector<2x1x1x2xf32> to vector<2x2xf32>
    %165 = vector.extract_strided_slice %136 {offsets = [0, 3, 2, 0], sizes = [2, 1, 1, 2], strides = [1, 1, 1, 1]} : vector<2x4x4x2xf32> to vector<2x1x1x2xf32>
    %166 = vector.shape_cast %165 : vector<2x1x1x2xf32> to vector<2x2xf32>
    %167 = vector.extract_strided_slice %136 {offsets = [0, 3, 3, 0], sizes = [2, 1, 1, 2], strides = [1, 1, 1, 1]} : vector<2x4x4x2xf32> to vector<2x1x1x2xf32>
    %168 = vector.shape_cast %167 : vector<2x1x1x2xf32> to vector<2x2xf32>
    %169 = tpu.concatenate %138, %140, %142, %144, %146, %148, %150, %152, %154, %156, %158, %160, %162, %164, %166, %168 in 1 : vector<2x2xf32>, vector<2x2xf32>, vector<2x2xf32>, vector<2x2xf32>, vector<2x2xf32>, vector<2x2xf32>, vector<2x2xf32>, vector<2x2xf32>, vector<2x2xf32>, vector<2x2xf32>, vector<2x2xf32>, vector<2x2xf32>, vector<2x2xf32>, vector<2x2xf32>, vector<2x2xf32>, vector<2x2xf32> -> vector<2x32xf32>
    %170 = arith.truncf %169 : vector<2x32xf32> to vector<2x32xbf16>
    %c0_178 = arith.constant 0 : index
    %c0_179 = arith.constant 0 : index
    %171 = vector.load %arg10[%c0_178, %c0_179] : memref<32x128xbf16, #tpu.memory_space<vmem>>, vector<32x128xbf16>
    %cst_180 = arith.constant dense<0.000000e+00> : vector<2x128xf32>
    %172 = tpu.matmul %170, %171, %cst_180 {dimension_numbers = #tpu.dot_dimension_numbers<[1], [0], [0], [1], [0, 0, 1, 1], [], []>} : vector<2x32xbf16>, vector<32x128xbf16>, vector<2x128xf32> -> vector<2x128xf32>
    %c0_181 = arith.constant 0 : index
    %c0_182 = arith.constant 0 : index
    %173 = vector.load %arg11[%c0_181, %c0_182] : memref<1x128xf32, #tpu.memory_space<vmem>>, vector<1x128xf32>
    %174 = vector.broadcast %173 : vector<1x128xf32> to vector<2x128xf32>
    %175 = arith.addf %172, %174 : vector<2x128xf32>
    %cst_183 = arith.constant 0.000000e+00 : f32
    %176 = vector.broadcast %cst_183 : f32 to vector<2x128xf32>
    %177 = arith.maximumf %175, %176 : vector<2x128xf32>
    %178 = arith.truncf %177 : vector<2x128xf32> to vector<2x128xbf16>
    %c0_184 = arith.constant 0 : index
    %c0_185 = arith.constant 0 : index
    %179 = vector.load %arg12[%c0_184, %c0_185] : memref<128x128xbf16, #tpu.memory_space<vmem>>, vector<128x128xbf16>
    %cst_186 = arith.constant dense<0.000000e+00> : vector<2x128xf32>
    %180 = tpu.matmul %178, %179, %cst_186 {dimension_numbers = #tpu.dot_dimension_numbers<[1], [0], [0], [1], [0, 0, 1, 1], [], []>} : vector<2x128xbf16>, vector<128x128xbf16>, vector<2x128xf32> -> vector<2x128xf32>
    %c0_187 = arith.constant 0 : index
    %c0_188 = arith.constant 0 : index
    %181 = vector.load %arg13[%c0_187, %c0_188] : memref<1x128xf32, #tpu.memory_space<vmem>>, vector<1x128xf32>
    %182 = vector.broadcast %181 : vector<1x128xf32> to vector<2x128xf32>
    %183 = arith.addf %180, %182 : vector<2x128xf32>
    %c0_189 = arith.constant 0 : index
    %c0_190 = arith.constant 0 : index
    %184 = vector.load %arg14[%c0_189, %c0_190] : memref<2x128xf32, #tpu.memory_space<vmem>>, vector<2x128xf32>
    tpu.vector_store %arg14[%c0_189, %c0_190], %183 {strides = array<i32>} : memref<2x128xf32, #tpu.memory_space<vmem>>, vector<2x128xf32>,
    return
  }
  func.func @transform_0(%arg0: i32) -> (i32, i32, i32, i32) {
    %c0_i32 = arith.constant 0 : i32
    %c0_i32_0 = arith.constant 0 : i32
    %c0_i32_1 = arith.constant 0 : i32
    %c0_i32_2 = arith.constant 0 : i32
    %c0_i32_3 = arith.constant 0 : i32
    return %c0_i32, %c0_i32_0, %c0_i32_1, %c0_i32_2 : i32, i32, i32, i32
  }
  func.func @transform_1(%arg0: i32) -> (i32, i32) {
    %c0_i32 = arith.constant 0 : i32
    %c0_i32_0 = arith.constant 0 : i32
    %c0_i32_1 = arith.constant 0 : i32
    return %c0_i32, %c0_i32_0 : i32, i32
  }
  func.func @transform_2(%arg0: i32) -> (i32, i32) {
    %c0_i32 = arith.constant 0 : i32
    %c0_i32_0 = arith.constant 0 : i32
    %c0_i32_1 = arith.constant 0 : i32
    return %c0_i32, %c0_i32_0 : i32, i32
  }
  func.func @transform_3(%arg0: i32) -> (i32, i32) {
    %c0_i32 = arith.constant 0 : i32
    %c0_i32_0 = arith.constant 0 : i32
    %c0_i32_1 = arith.constant 0 : i32
    return %c0_i32, %c0_i32_0 : i32, i32
  }
  func.func @transform_4(%arg0: i32) -> (i32, i32) {
    %c0_i32 = arith.constant 0 : i32
    %c0_i32_0 = arith.constant 0 : i32
    %c0_i32_1 = arith.constant 0 : i32
    return %c0_i32, %c0_i32_0 : i32, i32
  }
  func.func @transform_5(%arg0: i32) -> (i32, i32) {
    %c0_i32 = arith.constant 0 : i32
    %c0_i32_0 = arith.constant 0 : i32
    %c0_i32_1 = arith.constant 0 : i32
    return %c0_i32, %c0_i32_0 : i32, i32
  }
  func.func @transform_6(%arg0: i32) -> (i32, i32) {
    %c0_i32 = arith.constant 0 : i32
    %c0_i32_0 = arith.constant 0 : i32
    %c0_i32_1 = arith.constant 0 : i32
    return %c0_i32, %c0_i32_0 : i32, i32
  }
  func.func @transform_7(%arg0: i32) -> (i32, i32) {
    %c0_i32 = arith.constant 0 : i32
    %c0_i32_0 = arith.constant 0 : i32
    %c0_i32_1 = arith.constant 0 : i32
    return %c0_i32, %c0_i32_0 : i32, i32
  }
  func.func @transform_8(%arg0: i32) -> (i32, i32) {
    %c0_i32 = arith.constant 0 : i32
    %c0_i32_0 = arith.constant 0 : i32
    %c0_i32_1 = arith.constant 0 : i32
    return %c0_i32, %c0_i32_0 : i32, i32
  }
  func.func @transform_9(%arg0: i32) -> (i32, i32) {
    %c0_i32 = arith.constant 0 : i32
    %c0_i32_0 = arith.constant 0 : i32
    %c0_i32_1 = arith.constant 0 : i32
    return %c0_i32, %c0_i32_0 : i32, i32
  }
  func.func @transform_10(%arg0: i32) -> (i32, i32) {
    %c0_i32 = arith.constant 0 : i32
    %c0_i32_0 = arith.constant 0 : i32
    %c0_i32_1 = arith.constant 0 : i32
    return %c0_i32, %c0_i32_0 : i32, i32
  }
  func.func @transform_11(%arg0: i32) -> (i32, i32) {
    %c0_i32 = arith.constant 0 : i32
    %c0_i32_0 = arith.constant 0 : i32
    %c0_i32_1 = arith.constant 0 : i32
    return %c0_i32, %c0_i32_0 : i32, i32
  }
  func.func @transform_12(%arg0: i32) -> (i32, i32) {
    %c0_i32 = arith.constant 0 : i32
    %c0_i32_0 = arith.constant 0 : i32
    %c0_i32_1 = arith.constant 0 : i32
    return %c0_i32, %c0_i32_0 : i32, i32
  }
  func.func @transform_13(%arg0: i32) -> (i32, i32) {
    %c0_i32 = arith.constant 0 : i32
    %c0_i32_0 = arith.constant 0 : i32
    %c0_i32_1 = arith.constant 0 : i32
    return %c0_i32, %c0_i32_0 : i32, i32
  }
}

</mosaic_0001>

<llo_original>
// kernel: encoder_forward.1
$region0: #{encoder_forward.1}
  #allocation0 [shape = 'u32[]', space=smem, size = 0x4, offset = 0x4, fixed_abs, tag = 'smem constant byte address 0x4 - core index']
  #allocation1 [shape = 'u32[144,128]{1,0:T(1,128)}', space=vmem, size = 0x12000, scoped, tag = 'internal scratch']
  #allocation2 [shape = 'f32[2,10,10,8]{3,2,1,0:T(8,128)}', space=vmem, size = 0x28000, scoped, tag = 'scratch operand']
  #allocation3 [shape = 'f32[2,8,8,4]{3,2,1,0:T(8,128)}', space=vmem, size = 0x10000, scoped, tag = 'scratch operand']
  #allocation4 [shape = 'f32[2,6,6,4]{3,2,1,0:T(8,128)}', space=vmem, size = 0xc000, scoped, tag = 'scratch operand']
  %s0 = inlined_call_operand.vmem [shape: f32[2,16,16,8], index: 0, kind: input, shape index: {}]
  %s1 = inlined_call_operand.vmem [shape: bf16[72,4], index: 1, kind: input, shape index: {}]
  %s2 = inlined_call_operand.vmem [shape: f32[1,4], index: 2, kind: input, shape index: {}]
  %s3 = inlined_call_operand.vmem [shape: f32[1,4], index: 3, kind: input, shape index: {}]
  %s4 = inlined_call_operand.vmem [shape: f32[1,4], index: 4, kind: input, shape index: {}]
  %s5 = inlined_call_operand.vmem [shape: bf16[36,2], index: 5, kind: input, shape index: {}]
  %s6 = inlined_call_operand.vmem [shape: f32[1,2], index: 6, kind: input, shape index: {}]
  %s7 = inlined_call_operand.vmem [shape: f32[1,2], index: 7, kind: input, shape index: {}]
  %s8 = inlined_call_operand.vmem [shape: f32[1,2], index: 8, kind: input, shape index: {}]
  %s9 = inlined_call_operand.vmem [shape: bf16[32,128], index: 9, kind: input, shape index: {}]
  %s10 = inlined_call_operand.vmem [shape: f32[1,128], index: 10, kind: input, shape index: {}]
  %s11 = inlined_call_operand.vmem [shape: bf16[128,128], index: 11, kind: input, shape index: {}]
  %s12 = inlined_call_operand.vmem [shape: f32[1,128], index: 12, kind: input, shape index: {}]
  %s13 = inlined_call_operand.hbm [shape: f32[2,128], index: 13, kind: output, shape index: {}]
  %s14 = sld [smem:[#allocation0]]
  $region62: #{encoder_forward.1} parent=0
    _
  %s16 = ssub.s32 1, %s14
  %s17 = scalar_select 0, %s16, %s14
  $region1: #{encoder_forward.1} parent=0
    #allocation5 [shape = 'u8[1024]{0}', space=vmem, size = 0x400, scoped, tag = 'output window, operand 0, single buffered']
    #allocation6 [shape = 's32[1]{0}', space=sflag, size = 0x4, scoped, tag = 'scoped memory for encoder_forward.1']
    %18 = vsyncpa [#allocation6], 0
    // Predicated region
    $region2: #{encoder_forward.1} parent=1 // pred_check
      _
    $region3: #{encoder_forward.1} parent=1 // pred_check_branch
      %20 = sbr.rel (0) target = $region5
    $region4: #{encoder_forward.1} parent=1 // pred_region
      _
    $region5: #{encoder_forward.1} parent=1 // pred_fallthru
      _
    // Predicated region
    $region6: #{encoder_forward.1} parent=1 // pred_check
      _
    $region7: #{encoder_forward.1} parent=1 // pred_check_branch
      %22 = sbr.rel (0) target = $region9
    $region8: #{encoder_forward.1} parent=1 // pred_region
      _
    $region9: #{encoder_forward.1} parent=1 // pred_fallthru
      _
    // Predicated region
    $region10: #{encoder_forward.1} parent=1 // pred_check
      _
    $region11: #{encoder_forward.1} parent=1 // pred_check_branch
      %24 = sbr.rel (0) target = $region13
    $region12: #{encoder_forward.1} parent=1 // pred_region
      _
    $region13: #{encoder_forward.1} parent=1 // pred_fallthru
      _
    // Predicated region
    $region14: #{encoder_forward.1} parent=1 // pred_check
      _
    $region15: #{encoder_forward.1} parent=1 // pred_check_branch
      %26 = sbr.rel (0) target = $region17
    $region16: #{encoder_forward.1} parent=1 // pred_region
      _
    $region17: #{encoder_forward.1} parent=1 // pred_fallthru
      _
    // Predicated region
    $region18: #{encoder_forward.1} parent=1 // pred_check
      _
    $region19: #{encoder_forward.1} parent=1 // pred_check_branch
      %28 = sbr.rel (0) target = $region21
    $region20: #{encoder_forward.1} parent=1 // pred_region
      _
    $region21: #{encoder_forward.1} parent=1 // pred_fallthru
      _
    // Predicated region
    $region22: #{encoder_forward.1} parent=1 // pred_check
      _
    $region23: #{encoder_forward.1} parent=1 // pred_check_branch
      %30 = sbr.rel (0) target = $region25
    $region24: #{encoder_forward.1} parent=1 // pred_region
      _
    $region25: #{encoder_forward.1} parent=1 // pred_fallthru
      _
    // Predicated region
    $region26: #{encoder_forward.1} parent=1 // pred_check
      _
    $region27: #{encoder_forward.1} parent=1 // pred_check_branch
      %32 = sbr.rel (0) target = $region29
    $region28: #{encoder_forward.1} parent=1 // pred_region
      _
    $region29: #{encoder_forward.1} parent=1 // pred_fallthru
      _
    // Predicated region
    $region30: #{encoder_forward.1} parent=1 // pred_check
      _
    $region31: #{encoder_forward.1} parent=1 // pred_check_branch
      %34 = sbr.rel (0) target = $region33
    $region32: #{encoder_forward.1} parent=1 // pred_region
      _
    $region33: #{encoder_forward.1} parent=1 // pred_fallthru
      _
    // Predicated region
    $region34: #{encoder_forward.1} parent=1 // pred_check
      _
    $region35: #{encoder_forward.1} parent=1 // pred_check_branch
      %36 = sbr.rel (0) target = $region37
    $region36: #{encoder_forward.1} parent=1 // pred_region
      _
    $region37: #{encoder_forward.1} parent=1 // pred_fallthru
      _
    // Predicated region
    $region38: #{encoder_forward.1} parent=1 // pred_check
      _
    $region39: #{encoder_forward.1} parent=1 // pred_check_branch
      %38 = sbr.rel (0) target = $region41
    $region40: #{encoder_forward.1} parent=1 // pred_region
      _
    $region41: #{encoder_forward.1} parent=1 // pred_fallthru
      _
    // Predicated region
    $region42: #{encoder_forward.1} parent=1 // pred_check
      _
    $region43: #{encoder_forward.1} parent=1 // pred_check_branch
      %40 = sbr.rel (0) target = $region45
    $region44: #{encoder_forward.1} parent=1 // pred_region
      _
    $region45: #{encoder_forward.1} parent=1 // pred_fallthru
      _
    // Predicated region
    $region46: #{encoder_forward.1} parent=1 // pred_check
      _
    $region47: #{encoder_forward.1} parent=1 // pred_check_branch
      %42 = sbr.rel (0) target = $region49
    $region48: #{encoder_forward.1} parent=1 // pred_region
      _
    $region49: #{encoder_forward.1} parent=1 // pred_fallthru
      _
    // Predicated region
    $region50: #{encoder_forward.1} parent=1 // pred_check
      _
    $region51: #{encoder_forward.1} parent=1 // pred_check_branch
      %44 = sbr.rel (0) target = $region53
    $region52: #{encoder_forward.1} parent=1 // pred_region
      _
    $region53: #{encoder_forward.1} parent=1 // pred_fallthru
      _
    %v46 = vld [vmem:[%s0] ss:$2 sm:$0xff]
    %s47 = scalar_lea.vmem %s0, 32
    %v48 = vld [vmem:[%s47] ss:$2 sm:$0xff]
    %s49 = scalar_lea.vmem %s0, 64
    %v50 = vld [vmem:[%s49] ss:$2 sm:$0xff]
    %s51 = scalar_lea.vmem %s0, 96
    %v52 = vld [vmem:[%s51] ss:$2 sm:$0xff]
    %s53 = scalar_lea.vmem %s0, 128
    %v54 = vld [vmem:[%s53] ss:$2 sm:$0xff]
    %s55 = scalar_lea.vmem %s0, 160
    %v56 = vld [vmem:[%s55] ss:$2 sm:$0xff]
    %s57 = scalar_lea.vmem %s0, 192
    %v58 = vld [vmem:[%s57] ss:$2 sm:$0xff]
    %s59 = scalar_lea.vmem %s0, 224
    %v60 = vld [vmem:[%s59] ss:$2 sm:$0xff]
    %s61 = scalar_lea.vmem %s0, 256
    %v62 = vld [vmem:[%s61] ss:$2 sm:$0xff]
    %s63 = scalar_lea.vmem %s0, 288
    %v64 = vld [vmem:[%s63] ss:$2 sm:$0xff]
    %s65 = scalar_lea.vmem %s0, 320
    %v66 = vld [vmem:[%s65] ss:$2 sm:$0xff]
    %s67 = scalar_lea.vmem %s0, 352
    %v68 = vld [vmem:[%s67] ss:$2 sm:$0xff]
    %s69 = scalar_lea.vmem %s0, 384
    %v70 = vld [vmem:[%s69] ss:$2 sm:$0xff]
    %s71 = scalar_lea.vmem %s0, 416
    %v72 = vld [vmem:[%s71] ss:$2 sm:$0xff]
    %s73 = scalar_lea.vmem %s0, 448
    %v74 = vld [vmem:[%s73] ss:$2 sm:$0xff]
    %s75 = scalar_lea.vmem %s0, 480
    %v76 = vld [vmem:[%s75] ss:$2 sm:$0xff]
    %s77 = scalar_lea.vmem %s0, 1
    %v78 = vld [vmem:[%s77] ss:$2 sm:$0xff]
    %s79 = scalar_lea.vmem %s0, 33
    %v80 = vld [vmem:[%s79] ss:$2 sm:$0xff]
    %s81 = scalar_lea.vmem %s0, 65
    %v82 = vld [vmem:[%s81] ss:$2 sm:$0xff]
    %s83 = scalar_lea.vmem %s0, 97
    %v84 = vld [vmem:[%s83] ss:$2 sm:$0xff]
    %s85 = scalar_lea.vmem %s0, 129
    %v86 = vld [vmem:[%s85] ss:$2 sm:$0xff]
    %s87 = scalar_lea.vmem %s0, 161
    %v88 = vld [vmem:[%s87] ss:$2 sm:$0xff]
    %s89 = scalar_lea.vmem %s0, 193
    %v90 = vld [vmem:[%s89] ss:$2 sm:$0xff]
    %s91 = scalar_lea.vmem %s0, 225
    %v92 = vld [vmem:[%s91] ss:$2 sm:$0xff]
    %s93 = scalar_lea.vmem %s0, 257
    %v94 = vld [vmem:[%s93] ss:$2 sm:$0xff]
    %s95 = scalar_lea.vmem %s0, 289
    %v96 = vld [vmem:[%s95] ss:$2 sm:$0xff]
    %s97 = scalar_lea.vmem %s0, 321
    %v98 = vld [vmem:[%s97] ss:$2 sm:$0xff]
    %s99 = scalar_lea.vmem %s0, 353
    %v100 = vld [vmem:[%s99] ss:$2 sm:$0xff]
    %s101 = scalar_lea.vmem %s0, 385
    %v102 = vld [vmem:[%s101] ss:$2 sm:$0xff]
    %s103 = scalar_lea.vmem %s0, 417
    %v104 = vld [vmem:[%s103] ss:$2 sm:$0xff]
    %s105 = scalar_lea.vmem %s0, 449
    %v106 = vld [vmem:[%s105] ss:$2 sm:$0xff]
    %s107 = scalar_lea.vmem %s0, 481
    %v108 = vld [vmem:[%s107] ss:$2 sm:$0xff]
    %s109 = scalar_lea.vmem %s0, 16
    %v110 = vld [vmem:[%s109] ss:$2 sm:$0xff]
    %s111 = scalar_lea.vmem %s109, 32
    %v112 = vld [vmem:[%s111] ss:$2 sm:$0xff]
    %s113 = scalar_lea.vmem %s109, 64
    %v114 = vld [vmem:[%s113] ss:$2 sm:$0xff]
    %s115 = scalar_lea.vmem %s109, 96
    %v116 = vld [vmem:[%s115] ss:$2 sm:$0xff]
    %s117 = scalar_lea.vmem %s109, 128
    %v118 = vld [vmem:[%s117] ss:$2 sm:$0xff]
    %s119 = scalar_lea.vmem %s109, 160
    %v120 = vld [vmem:[%s119] ss:$2 sm:$0xff]
    %s121 = scalar_lea.vmem %s109, 192
    %v122 = vld [vmem:[%s121] ss:$2 sm:$0xff]
    %s123 = scalar_lea.vmem %s109, 224
    %v124 = vld [vmem:[%s123] ss:$2 sm:$0xff]
    %s125 = scalar_lea.vmem %s109, 256
    %v126 = vld [vmem:[%s125] ss:$2 sm:$0xff]
    %s127 = scalar_lea.vmem %s109, 288
    %v128 = vld [vmem:[%s127] ss:$2 sm:$0xff]
    %s129 = scalar_lea.vmem %s109, 320
    %v130 = vld [vmem:[%s129] ss:$2 sm:$0xff]
    %s131 = scalar_lea.vmem %s109, 352
    %v132 = vld [vmem:[%s131] ss:$2 sm:$0xff]
    %s133 = scalar_lea.vmem %s109, 384
    %v134 = vld [vmem:[%s133] ss:$2 sm:$0xff]
    %s135 = scalar_lea.vmem %s109, 416
    %v136 = vld [vmem:[%s135] ss:$2 sm:$0xff]
    %s137 = scalar_lea.vmem %s109, 448
    %v138 = vld [vmem:[%s137] ss:$2 sm:$0xff]
    %s139 = scalar_lea.vmem %s109, 480
    %v140 = vld [vmem:[%s139] ss:$2 sm:$0xff]
    %s141 = scalar_lea.vmem %s109, 1
    %v142 = vld [vmem:[%s141] ss:$2 sm:$0xff]
    %s143 = scalar_lea.vmem %s109, 33
    %v144 = vld [vmem:[%s143] ss:$2 sm:$0xff]
    %s145 = scalar_lea.vmem %s109, 65
    %v146 = vld [vmem:[%s145] ss:$2 sm:$0xff]
    %s147 = scalar_lea.vmem %s109, 97
    %v148 = vld [vmem:[%s147] ss:$2 sm:$0xff]
    %s149 = scalar_lea.vmem %s109, 129
    %v150 = vld [vmem:[%s149] ss:$2 sm:$0xff]
    %s151 = scalar_lea.vmem %s109, 161
    %v152 = vld [vmem:[%s151] ss:$2 sm:$0xff]
    %s153 = scalar_lea.vmem %s109, 193
    %v154 = vld [vmem:[%s153] ss:$2 sm:$0xff]
    %s155 = scalar_lea.vmem %s109, 225
    %v156 = vld [vmem:[%s155] ss:$2 sm:$0xff]
    %s157 = scalar_lea.vmem %s109, 257
    %v158 = vld [vmem:[%s157] ss:$2 sm:$0xff]
    %s159 = scalar_lea.vmem %s109, 289
    %v160 = vld [vmem:[%s159] ss:$2 sm:$0xff]
    %s161 = scalar_lea.vmem %s109, 321
    %v162 = vld [vmem:[%s161] ss:$2 sm:$0xff]
    %s163 = scalar_lea.vmem %s109, 353
    %v164 = vld [vmem:[%s163] ss:$2 sm:$0xff]
    %s165 = scalar_lea.vmem %s109, 385
    %v166 = vld [vmem:[%s165] ss:$2 sm:$0xff]
    %s167 = scalar_lea.vmem %s109, 417
    %v168 = vld [vmem:[%s167] ss:$2 sm:$0xff]
    %s169 = scalar_lea.vmem %s109, 449
    %v170 = vld [vmem:[%s169] ss:$2 sm:$0xff]
    %s171 = scalar_lea.vmem %s109, 481
    %v172 = vld [vmem:[%s171] ss:$2 sm:$0xff]
    %v173 = vmax.f32 %v46, %v78
    %v174 = vmax.f32 %v48, %v80
    %v175 = vmax.f32 %v50, %v82
    %v176 = vmax.f32 %v52, %v84
    %v177 = vmax.f32 %v54, %v86
    %v178 = vmax.f32 %v56, %v88
    %v179 = vmax.f32 %v58, %v90
    %v180 = vmax.f32 %v60, %v92
    %v181 = vmax.f32 %v62, %v94
    %v182 = vmax.f32 %v64, %v96
    %v183 = vmax.f32 %v66, %v98
    %v184 = vmax.f32 %v68, %v100
    %v185 = vmax.f32 %v70, %v102
    %v186 = vmax.f32 %v72, %v104
    %v187 = vmax.f32 %v74, %v106
    %v188 = vmax.f32 %v76, %v108
    %v189 = vmax.f32 %v110, %v142
    %v190 = vmax.f32 %v112, %v144
    %v191 = vmax.f32 %v114, %v146
    %v192 = vmax.f32 %v116, %v148
    %v193 = vmax.f32 %v118, %v150
    %v194 = vmax.f32 %v120, %v152
    %v195 = vmax.f32 %v122, %v154
    %v196 = vmax.f32 %v124, %v156
    %v197 = vmax.f32 %v126, %v158
    %v198 = vmax.f32 %v128, %v160
    %v199 = vmax.f32 %v130, %v162
    %v200 = vmax.f32 %v132, %v164
    %v201 = vmax.f32 %v134, %v166
    %v202 = vmax.f32 %v136, %v168
    %v203 = vmax.f32 %v138, %v170
    %v204 = vmax.f32 %v140, %v172
    %v205 = vmax.f32 %v173, %v189
    %v206 = vmax.f32 %v174, %v190
    %v207 = vmax.f32 %v175, %v191
    %v208 = vmax.f32 %v176, %v192
    %v209 = vmax.f32 %v177, %v193
    %v210 = vmax.f32 %v178, %v194
    %v211 = vmax.f32 %v179, %v195
    %v212 = vmax.f32 %v180, %v196
    %v213 = vmax.f32 %v181, %v197
    %v214 = vmax.f32 %v182, %v198
    %v215 = vmax.f32 %v183, %v199
    %v216 = vmax.f32 %v184, %v200
    %v217 = vmax.f32 %v185, %v201
    %v218 = vmax.f32 %v186, %v202
    %v219 = vmax.f32 %v187, %v203
    %v220 = vmax.f32 %v188, %v204
    %vm221 = vcmask 64512
    %222 = vst.msk [vmem:[#allocation2] sm:$0xff] %vm221, 0.0
    %vm223 = vcmask 58368
    %224 = vst.msk [vmem:[#allocation2 + $0x8] sm:$0x3] %vm223, 0.0
    %225 = vst.msk [vmem:[#allocation2 + $0xa0] sm:$0xff] %vm221, 0.0
    %226 = vst.msk [vmem:[#allocation2 + $0xa8] sm:$0x3] %vm223, 0.0
    %s227 = scalar_lea.vmem [#allocation2], 144
    %228 = vst.msk [vmem:[%s227] sm:$0xff] %vm221, 0.0
    %229 = vst.msk [vmem:[%s227 + $0x8] sm:$0x3] %vm223, 0.0
    %230 = vst.msk [vmem:[%s227 + $0xa0] sm:$0xff] %vm221, 0.0
    %231 = vst.msk [vmem:[%s227 + $0xa8] sm:$0x3] %vm223, 0.0
    %vm232 = vcmask 57344
    %233 = vst.msk [vmem:[#allocation2] sm:$0x1] %vm232, 0.0
    %234 = vst.msk [vmem:[#allocation2 + $0x10] sm:$0x1] %vm232, 0.0
    %235 = vst.msk [vmem:[#allocation2 + $0x20] sm:$0x1] %vm232, 0.0
    %236 = vst.msk [vmem:[#allocation2 + $0x30] sm:$0x1] %vm232, 0.0
    %237 = vst.msk [vmem:[#allocation2 + $0x40] sm:$0x1] %vm232, 0.0
    %238 = vst.msk [vmem:[#allocation2 + $0x50] sm:$0x1] %vm232, 0.0
    %239 = vst.msk [vmem:[#allocation2 + $0x60] sm:$0x1] %vm232, 0.0
    %240 = vst.msk [vmem:[#allocation2 + $0x70] sm:$0x1] %vm232, 0.0
    %241 = vst.msk [vmem:[#allocation2 + $0x80] sm:$0x1] %vm232, 0.0
    %242 = vst.msk [vmem:[#allocation2 + $0x90] sm:$0x1] %vm232, 0.0
    %243 = vst.msk [vmem:[#allocation2 + $0xa0] sm:$0x1] %vm232, 0.0
    %244 = vst.msk [vmem:[#allocation2 + $0xb0] sm:$0x1] %vm232, 0.0
    %245 = vst.msk [vmem:[#allocation2 + $0xc0] sm:$0x1] %vm232, 0.0
    %246 = vst.msk [vmem:[#allocation2 + $0xd0] sm:$0x1] %vm232, 0.0
    %247 = vst.msk [vmem:[#allocation2 + $0xe0] sm:$0x1] %vm232, 0.0
    %248 = vst.msk [vmem:[#allocation2 + $0xf0] sm:$0x1] %vm232, 0.0
    %249 = vst.msk [vmem:[#allocation2 + $0x100] sm:$0x1] %vm232, 0.0
    %250 = vst.msk [vmem:[#allocation2 + $0x110] sm:$0x1] %vm232, 0.0
    %251 = vst.msk [vmem:[#allocation2 + $0x120] sm:$0x1] %vm232, 0.0
    %252 = vst.msk [vmem:[#allocation2 + $0x130] sm:$0x1] %vm232, 0.0
    %253 = vst.msk [vmem:[#allocation2 + $0x9] sm:$0x1] %vm232, 0.0
    %254 = vst.msk [vmem:[#allocation2 + $0x19] sm:$0x1] %vm232, 0.0
    %255 = vst.msk [vmem:[#allocation2 + $0x29] sm:$0x1] %vm232, 0.0
    %256 = vst.msk [vmem:[#allocation2 + $0x39] sm:$0x1] %vm232, 0.0
    %257 = vst.msk [vmem:[#allocation2 + $0x49] sm:$0x1] %vm232, 0.0
    %258 = vst.msk [vmem:[#allocation2 + $0x59] sm:$0x1] %vm232, 0.0
    %259 = vst.msk [vmem:[#allocation2 + $0x69] sm:$0x1] %vm232, 0.0
    %260 = vst.msk [vmem:[#allocation2 + $0x79] sm:$0x1] %vm232, 0.0
    %261 = vst.msk [vmem:[#allocation2 + $0x89] sm:$0x1] %vm232, 0.0
    %262 = vst.msk [vmem:[#allocation2 + $0x99] sm:$0x1] %vm232, 0.0
    %263 = vst.msk [vmem:[#allocation2 + $0xa9] sm:$0x1] %vm232, 0.0
    %264 = vst.msk [vmem:[#allocation2 + $0xb9] sm:$0x1] %vm232, 0.0
    %265 = vst.msk [vmem:[#allocation2 + $0xc9] sm:$0x1] %vm232, 0.0
    %266 = vst.msk [vmem:[#allocation2 + $0xd9] sm:$0x1] %vm232, 0.0
    %267 = vst.msk [vmem:[#allocation2 + $0xe9] sm:$0x1] %vm232, 0.0
    %268 = vst.msk [vmem:[#allocation2 + $0xf9] sm:$0x1] %vm232, 0.0
    %269 = vst.msk [vmem:[#allocation2 + $0x109] sm:$0x1] %vm232, 0.0
    %270 = vst.msk [vmem:[#allocation2 + $0x119] sm:$0x1] %vm232, 0.0
    %271 = vst.msk [vmem:[#allocation2 + $0x129] sm:$0x1] %vm232, 0.0
    %272 = vst.msk [vmem:[#allocation2 + $0x139] sm:$0x1] %vm232, 0.0
    %s273 = scalar_lea.vmem [#allocation2], 16
    %274 = vst.msk [vmem:[%s273 + $0x1] sm:$0xff] %vm221, %v205
    %275 = vst.msk [vmem:[%s273 + $0x11] sm:$0xff] %vm221, %v206
    %276 = vst.msk [vmem:[%s273 + $0x21] sm:$0xff] %vm221, %v207
    %277 = vst.msk [vmem:[%s273 + $0x31] sm:$0xff] %vm221, %v208
    %278 = vst.msk [vmem:[%s273 + $0x41] sm:$0xff] %vm221, %v209
    %279 = vst.msk [vmem:[%s273 + $0x51] sm:$0xff] %vm221, %v210
    %280 = vst.msk [vmem:[%s273 + $0x61] sm:$0xff] %vm221, %v211
    %281 = vst.msk [vmem:[%s273 + $0x71] sm:$0xff] %vm221, %v212
    %282 = vst.msk [vmem:[%s273 + $0xa1] sm:$0xff] %vm221, %v213
    %283 = vst.msk [vmem:[%s273 + $0xb1] sm:$0xff] %vm221, %v214
    %284 = vst.msk [vmem:[%s273 + $0xc1] sm:$0xff] %vm221, %v215
    %285 = vst.msk [vmem:[%s273 + $0xd1] sm:$0xff] %vm221, %v216
    %286 = vst.msk [vmem:[%s273 + $0xe1] sm:$0xff] %vm221, %v217
    %287 = vst.msk [vmem:[%s273 + $0xf1] sm:$0xff] %vm221, %v218
    %288 = vst.msk [vmem:[%s273 + $0x101] sm:$0xff] %vm221, %v219
    %289 = vst.msk [vmem:[%s273 + $0x111] sm:$0xff] %vm221, %v220
    %v290 = vld [vmem:[#allocation2] sm:$0xff]
    %v291 = vld [vmem:[#allocation2 + $0x10] sm:$0xff]
    %v292 = vld [vmem:[#allocation2 + $0x20] sm:$0xff]
    %v293 = vld [vmem:[#allocation2 + $0x30] sm:$0xff]
    %v294 = vld [vmem:[#allocation2 + $0x40] sm:$0xff]
    %v295 = vld [vmem:[#allocation2 + $0x50] sm:$0xff]
    %v296 = vld [vmem:[#allocation2 + $0x60] sm:$0xff]
    %v297 = vld [vmem:[#allocation2 + $0x70] sm:$0xff]
    %v298 = vld [vmem:[#allocation2 + $0xa0] sm:$0xff]
    %v299 = vld [vmem:[#allocation2 + $0xb0] sm:$0xff]
    %v300 = vld [vmem:[#allocation2 + $0xc0] sm:$0xff]
    %v301 = vld [vmem:[#allocation2 + $0xd0] sm:$0xff]
    %v302 = vld [vmem:[#allocation2 + $0xe0] sm:$0xff]
    %v303 = vld [vmem:[#allocation2 + $0xf0] sm:$0xff]
    %v304 = vld [vmem:[#allocation2 + $0x100] sm:$0xff]
    %v305 = vld [vmem:[#allocation2 + $0x110] sm:$0xff]
    %v306 = vld [vmem:[#allocation2 + $0x1] sm:$0xff]
    %v307 = vld [vmem:[#allocation2 + $0x11] sm:$0xff]
    %v308 = vld [vmem:[#allocation2 + $0x21] sm:$0xff]
    %v309 = vld [vmem:[#allocation2 + $0x31] sm:$0xff]
    %v310 = vld [vmem:[#allocation2 + $0x41] sm:$0xff]
    %v311 = vld [vmem:[#allocation2 + $0x51] sm:$0xff]
    %v312 = vld [vmem:[#allocation2 + $0x61] sm:$0xff]
    %v313 = vld [vmem:[#allocation2 + $0x71] sm:$0xff]
    %v314 = vld [vmem:[#allocation2 + $0xa1] sm:$0xff]
    %v315 = vld [vmem:[#allocation2 + $0xb1] sm:$0xff]
    %v316 = vld [vmem:[#allocation2 + $0xc1] sm:$0xff]
    %v317 = vld [vmem:[#allocation2 + $0xd1] sm:$0xff]
    %v318 = vld [vmem:[#allocation2 + $0xe1] sm:$0xff]
    %v319 = vld [vmem:[#allocation2 + $0xf1] sm:$0xff]
    %v320 = vld [vmem:[#allocation2 + $0x101] sm:$0xff]
    %v321 = vld [vmem:[#allocation2 + $0x111] sm:$0xff]
    %v322 = vld [vmem:[#allocation2 + $0x2] sm:$0xff]
    %v323 = vld [vmem:[#allocation2 + $0x12] sm:$0xff]
    %v324 = vld [vmem:[#allocation2 + $0x22] sm:$0xff]
    %v325 = vld [vmem:[#allocation2 + $0x32] sm:$0xff]
    %v326 = vld [vmem:[#allocation2 + $0x42] sm:$0xff]
    %v327 = vld [vmem:[#allocation2 + $0x52] sm:$0xff]
    %v328 = vld [vmem:[#allocation2 + $0x62] sm:$0xff]
    %v329 = vld [vmem:[#allocation2 + $0x72] sm:$0xff]
    %v330 = vld [vmem:[#allocation2 + $0xa2] sm:$0xff]
    %v331 = vld [vmem:[#allocation2 + $0xb2] sm:$0xff]
    %v332 = vld [vmem:[#allocation2 + $0xc2] sm:$0xff]
    %v333 = vld [vmem:[#allocation2 + $0xd2] sm:$0xff]
    %v334 = vld [vmem:[#allocation2 + $0xe2] sm:$0xff]
    %v335 = vld [vmem:[#allocation2 + $0xf2] sm:$0xff]
    %v336 = vld [vmem:[#allocation2 + $0x102] sm:$0xff]
    %v337 = vld [vmem:[#allocation2 + $0x112] sm:$0xff]
    %v338 = vld [vmem:[%s273] sm:$0xff]
    %v339 = vld [vmem:[%s273 + $0x10] sm:$0xff]
    %v340 = vld [vmem:[%s273 + $0x20] sm:$0xff]
    %v341 = vld [vmem:[%s273 + $0x30] sm:$0xff]
    %v342 = vld [vmem:[%s273 + $0x40] sm:$0xff]
    %v343 = vld [vmem:[%s273 + $0x50] sm:$0xff]
    %v344 = vld [vmem:[%s273 + $0x60] sm:$0xff]
    %v345 = vld [vmem:[%s273 + $0x70] sm:$0xff]
    %v346 = vld [vmem:[%s273 + $0xa0] sm:$0xff]
    %v347 = vld [vmem:[%s273 + $0xb0] sm:$0xff]
    %v348 = vld [vmem:[%s273 + $0xc0] sm:$0xff]
    %v349 = vld [vmem:[%s273 + $0xd0] sm:$0xff]
    %v350 = vld [vmem:[%s273 + $0xe0] sm:$0xff]
    %v351 = vld [vmem:[%s273 + $0xf0] sm:$0xff]
    %v352 = vld [vmem:[%s273 + $0x100] sm:$0xff]
    %v353 = vld [vmem:[%s273 + $0x110] sm:$0xff]
    %v354 = vld [vmem:[%s273 + $0x1] sm:$0xff]
    %v355 = vld [vmem:[%s273 + $0x11] sm:$0xff]
    %v356 = vld [vmem:[%s273 + $0x21] sm:$0xff]
    %v357 = vld [vmem:[%s273 + $0x31] sm:$0xff]
    %v358 = vld [vmem:[%s273 + $0x41] sm:$0xff]
    %v359 = vld [vmem:[%s273 + $0x51] sm:$0xff]
    %v360 = vld [vmem:[%s273 + $0x61] sm:$0xff]
    %v361 = vld [vmem:[%s273 + $0x71] sm:$0xff]
    %v362 = vld [vmem:[%s273 + $0xa1] sm:$0xff]
    %v363 = vld [vmem:[%s273 + $0xb1] sm:$0xff]
    %v364 = vld [vmem:[%s273 + $0xc1] sm:$0xff]
    %v365 = vld [vmem:[%s273 + $0xd1] sm:$0xff]
    %v366 = vld [vmem:[%s273 + $0xe1] sm:$0xff]
    %v367 = vld [vmem:[%s273 + $0xf1] sm:$0xff]
    %v368 = vld [vmem:[%s273 + $0x101] sm:$0xff]
    %v369 = vld [vmem:[%s273 + $0x111] sm:$0xff]
    %v370 = vld [vmem:[%s273 + $0x2] sm:$0xff]
    %v371 = vld [vmem:[%s273 + $0x12] sm:$0xff]
    %v372 = vld [vmem:[%s273 + $0x22] sm:$0xff]
    %v373 = vld [vmem:[%s273 + $0x32] sm:$0xff]
    %v374 = vld [vmem:[%s273 + $0x42] sm:$0xff]
    %v375 = vld [vmem:[%s273 + $0x52] sm:$0xff]
    %v376 = vld [vmem:[%s273 + $0x62] sm:$0xff]
    %v377 = vld [vmem:[%s273 + $0x72] sm:$0xff]
    %v378 = vld [vmem:[%s273 + $0xa2] sm:$0xff]
    %v379 = vld [vmem:[%s273 + $0xb2] sm:$0xff]
    %v380 = vld [vmem:[%s273 + $0xc2] sm:$0xff]
    %v381 = vld [vmem:[%s273 + $0xd2] sm:$0xff]
    %v382 = vld [vmem:[%s273 + $0xe2] sm:$0xff]
    %v383 = vld [vmem:[%s273 + $0xf2] sm:$0xff]
    %v384 = vld [vmem:[%s273 + $0x102] sm:$0xff]
    %v385 = vld [vmem:[%s273 + $0x112] sm:$0xff]
    %s386 = scalar_lea.vmem [#allocation2], 32
    %v387 = vld [vmem:[%s386] sm:$0xff]
    %v388 = vld [vmem:[%s386 + $0x10] sm:$0xff]
    %v389 = vld [vmem:[%s386 + $0x20] sm:$0xff]
    %v390 = vld [vmem:[%s386 + $0x30] sm:$0xff]
    %v391 = vld [vmem:[%s386 + $0x40] sm:$0xff]
    %v392 = vld [vmem:[%s386 + $0x50] sm:$0xff]
    %v393 = vld [vmem:[%s386 + $0x60] sm:$0xff]
    %v394 = vld [vmem:[%s386 + $0x70] sm:$0xff]
    %v395 = vld [vmem:[%s386 + $0xa0] sm:$0xff]
    %v396 = vld [vmem:[%s386 + $0xb0] sm:$0xff]
    %v397 = vld [vmem:[%s386 + $0xc0] sm:$0xff]
    %v398 = vld [vmem:[%s386 + $0xd0] sm:$0xff]
    %v399 = vld [vmem:[%s386 + $0xe0] sm:$0xff]
    %v400 = vld [vmem:[%s386 + $0xf0] sm:$0xff]
    %v401 = vld [vmem:[%s386 + $0x100] sm:$0xff]
    %v402 = vld [vmem:[%s386 + $0x110] sm:$0xff]
    %v403 = vld [vmem:[%s386 + $0x1] sm:$0xff]
    %v404 = vld [vmem:[%s386 + $0x11] sm:$0xff]
    %v405 = vld [vmem:[%s386 + $0x21] sm:$0xff]
    %v406 = vld [vmem:[%s386 + $0x31] sm:$0xff]
    %v407 = vld [vmem:[%s386 + $0x41] sm:$0xff]
    %v408 = vld [vmem:[%s386 + $0x51] sm:$0xff]
    %v409 = vld [vmem:[%s386 + $0x61] sm:$0xff]
    %v410 = vld [vmem:[%s386 + $0x71] sm:$0xff]
    %v411 = vld [vmem:[%s386 + $0xa1] sm:$0xff]
    %v412 = vld [vmem:[%s386 + $0xb1] sm:$0xff]
    %v413 = vld [vmem:[%s386 + $0xc1] sm:$0xff]
    %v414 = vld [vmem:[%s386 + $0xd1] sm:$0xff]
    %v415 = vld [vmem:[%s386 + $0xe1] sm:$0xff]
    %v416 = vld [vmem:[%s386 + $0xf1] sm:$0xff]
    %v417 = vld [vmem:[%s386 + $0x101] sm:$0xff]
    %v418 = vld [vmem:[%s386 + $0x111] sm:$0xff]
    %v419 = vld [vmem:[%s386 + $0x2] sm:$0xff]
    %v420 = vld [vmem:[%s386 + $0x12] sm:$0xff]
    %v421 = vld [vmem:[%s386 + $0x22] sm:$0xff]
    %v422 = vld [vmem:[%s386 + $0x32] sm:$0xff]
    %v423 = vld [vmem:[%s386 + $0x42] sm:$0xff]
    %v424 = vld [vmem:[%s386 + $0x52] sm:$0xff]
    %v425 = vld [vmem:[%s386 + $0x62] sm:$0xff]
    %v426 = vld [vmem:[%s386 + $0x72] sm:$0xff]
    %v427 = vld [vmem:[%s386 + $0xa2] sm:$0xff]
    %v428 = vld [vmem:[%s386 + $0xb2] sm:$0xff]
    %v429 = vld [vmem:[%s386 + $0xc2] sm:$0xff]
    %v430 = vld [vmem:[%s386 + $0xd2] sm:$0xff]
    %v431 = vld [vmem:[%s386 + $0xe2] sm:$0xff]
    %v432 = vld [vmem:[%s386 + $0xf2] sm:$0xff]
    %v433 = vld [vmem:[%s386 + $0x102] sm:$0xff]
    %v434 = vld [vmem:[%s386 + $0x112] sm:$0xff]
    %451 = vrot.lane.b32.xlu0 %v306, 8
    %v452 = vpop.permute.xlu0 %451
    %453 = vrot.lane.b32.xlu0 %v307, 8
    %v454 = vpop.permute.xlu0 %453
    %455 = vrot.lane.b32.xlu0 %v308, 8
    %v456 = vpop.permute.xlu0 %455
    %457 = vrot.lane.b32.xlu0 %v309, 8
    %v458 = vpop.permute.xlu0 %457
    %459 = vrot.lane.b32.xlu0 %v310, 8
    %v460 = vpop.permute.xlu0 %459
    %461 = vrot.lane.b32.xlu0 %v311, 8
    %v462 = vpop.permute.xlu0 %461
    %463 = vrot.lane.b32.xlu0 %v312, 8
    %v464 = vpop.permute.xlu0 %463
    %465 = vrot.lane.b32.xlu0 %v313, 8
    %v466 = vpop.permute.xlu0 %465
    %467 = vrot.lane.b32.xlu0 %v314, 8
    %v468 = vpop.permute.xlu0 %467
    %469 = vrot.lane.b32.xlu0 %v315, 8
    %v470 = vpop.permute.xlu0 %469
    %471 = vrot.lane.b32.xlu0 %v316, 8
    %v472 = vpop.permute.xlu0 %471
    %473 = vrot.lane.b32.xlu0 %v317, 8
    %v474 = vpop.permute.xlu0 %473
    %475 = vrot.lane.b32.xlu0 %v318, 8
    %v476 = vpop.permute.xlu0 %475
    %477 = vrot.lane.b32.xlu0 %v319, 8
    %v478 = vpop.permute.xlu0 %477
    %479 = vrot.lane.b32.xlu0 %v320, 8
    %v480 = vpop.permute.xlu0 %479
    %481 = vrot.lane.b32.xlu0 %v321, 8
    %v482 = vpop.permute.xlu0 %481
    %515 = vrot.lane.b32.xlu0 %v322, 16
    %v516 = vpop.permute.xlu0 %515
    %517 = vrot.lane.b32.xlu0 %v323, 16
    %v518 = vpop.permute.xlu0 %517
    %519 = vrot.lane.b32.xlu0 %v324, 16
    %v520 = vpop.permute.xlu0 %519
    %521 = vrot.lane.b32.xlu0 %v325, 16
    %v522 = vpop.permute.xlu0 %521
    %523 = vrot.lane.b32.xlu0 %v326, 16
    %v524 = vpop.permute.xlu0 %523
    %525 = vrot.lane.b32.xlu0 %v327, 16
    %v526 = vpop.permute.xlu0 %525
    %527 = vrot.lane.b32.xlu0 %v328, 16
    %v528 = vpop.permute.xlu0 %527
    %529 = vrot.lane.b32.xlu0 %v329, 16
    %v530 = vpop.permute.xlu0 %529
    %531 = vrot.lane.b32.xlu0 %v330, 16
    %v532 = vpop.permute.xlu0 %531
    %533 = vrot.lane.b32.xlu0 %v331, 16
    %v534 = vpop.permute.xlu0 %533
    %535 = vrot.lane.b32.xlu0 %v332, 16
    %v536 = vpop.permute.xlu0 %535
    %537 = vrot.lane.b32.xlu0 %v333, 16
    %v538 = vpop.permute.xlu0 %537
    %539 = vrot.lane.b32.xlu0 %v334, 16
    %v540 = vpop.permute.xlu0 %539
    %541 = vrot.lane.b32.xlu0 %v335, 16
    %v542 = vpop.permute.xlu0 %541
    %543 = vrot.lane.b32.xlu0 %v336, 16
    %v544 = vpop.permute.xlu0 %543
    %545 = vrot.lane.b32.xlu0 %v337, 16
    %v546 = vpop.permute.xlu0 %545
    %579 = vrot.lane.b32.xlu0 %v338, 24
    %v580 = vpop.permute.xlu0 %579
    %581 = vrot.lane.b32.xlu0 %v339, 24
    %v582 = vpop.permute.xlu0 %581
    %583 = vrot.lane.b32.xlu0 %v340, 24
    %v584 = vpop.permute.xlu0 %583
    %585 = vrot.lane.b32.xlu0 %v341, 24
    %v586 = vpop.permute.xlu0 %585
    %587 = vrot.lane.b32.xlu0 %v342, 24
    %v588 = vpop.permute.xlu0 %587
    %589 = vrot.lane.b32.xlu0 %v343, 24
    %v590 = vpop.permute.xlu0 %589
    %591 = vrot.lane.b32.xlu0 %v344, 24
    %v592 = vpop.permute.xlu0 %591
    %593 = vrot.lane.b32.xlu0 %v345, 24
    %v594 = vpop.permute.xlu0 %593
    %595 = vrot.lane.b32.xlu0 %v346, 24
    %v596 = vpop.permute.xlu0 %595
    %597 = vrot.lane.b32.xlu0 %v347, 24
    %v598 = vpop.permute.xlu0 %597
    %599 = vrot.lane.b32.xlu0 %v348, 24
    %v600 = vpop.permute.xlu0 %599
    %601 = vrot.lane.b32.xlu0 %v349, 24
    %v602 = vpop.permute.xlu0 %601
    %603 = vrot.lane.b32.xlu0 %v350, 24
    %v604 = vpop.permute.xlu0 %603
    %605 = vrot.lane.b32.xlu0 %v351, 24
    %v606 = vpop.permute.xlu0 %605
    %607 = vrot.lane.b32.xlu0 %v352, 24
    %v608 = vpop.permute.xlu0 %607
    %609 = vrot.lane.b32.xlu0 %v353, 24
    %v610 = vpop.permute.xlu0 %609
    %643 = vrot.lane.b32.xlu0 %v354, 32
    %v644 = vpop.permute.xlu0 %643
    %645 = vrot.lane.b32.xlu0 %v355, 32
    %v646 = vpop.permute.xlu0 %645
    %647 = vrot.lane.b32.xlu0 %v356, 32
    %v648 = vpop.permute.xlu0 %647
    %649 = vrot.lane.b32.xlu0 %v357, 32
    %v650 = vpop.permute.xlu0 %649
    %651 = vrot.lane.b32.xlu0 %v358, 32
    %v652 = vpop.permute.xlu0 %651
    %653 = vrot.lane.b32.xlu0 %v359, 32
    %v654 = vpop.permute.xlu0 %653
    %655 = vrot.lane.b32.xlu0 %v360, 32
    %v656 = vpop.permute.xlu0 %655
    %657 = vrot.lane.b32.xlu0 %v361, 32
    %v658 = vpop.permute.xlu0 %657
    %659 = vrot.lane.b32.xlu0 %v362, 32
    %v660 = vpop.permute.xlu0 %659
    %661 = vrot.lane.b32.xlu0 %v363, 32
    %v662 = vpop.permute.xlu0 %661
    %663 = vrot.lane.b32.xlu0 %v364, 32
    %v664 = vpop.permute.xlu0 %663
    %665 = vrot.lane.b32.xlu0 %v365, 32
    %v666 = vpop.permute.xlu0 %665
    %667 = vrot.lane.b32.xlu0 %v366, 32
    %v668 = vpop.permute.xlu0 %667
    %669 = vrot.lane.b32.xlu0 %v367, 32
    %v670 = vpop.permute.xlu0 %669
    %671 = vrot.lane.b32.xlu0 %v368, 32
    %v672 = vpop.permute.xlu0 %671
    %673 = vrot.lane.b32.xlu0 %v369, 32
    %v674 = vpop.permute.xlu0 %673
    %707 = vrot.lane.b32.xlu0 %v370, 40
    %v708 = vpop.permute.xlu0 %707
    %709 = vrot.lane.b32.xlu0 %v371, 40
    %v710 = vpop.permute.xlu0 %709
    %711 = vrot.lane.b32.xlu0 %v372, 40
    %v712 = vpop.permute.xlu0 %711
    %713 = vrot.lane.b32.xlu0 %v373, 40
    %v714 = vpop.permute.xlu0 %713
    %715 = vrot.lane.b32.xlu0 %v374, 40
    %v716 = vpop.permute.xlu0 %715
    %717 = vrot.lane.b32.xlu0 %v375, 40
    %v718 = vpop.permute.xlu0 %717
    %719 = vrot.lane.b32.xlu0 %v376, 40
    %v720 = vpop.permute.xlu0 %719
    %721 = vrot.lane.b32.xlu0 %v377, 40
    %v722 = vpop.permute.xlu0 %721
    %723 = vrot.lane.b32.xlu0 %v378, 40
    %v724 = vpop.permute.xlu0 %723
    %725 = vrot.lane.b32.xlu0 %v379, 40
    %v726 = vpop.permute.xlu0 %725
    %727 = vrot.lane.b32.xlu0 %v380, 40
    %v728 = vpop.permute.xlu0 %727
    %729 = vrot.lane.b32.xlu0 %v381, 40
    %v730 = vpop.permute.xlu0 %729
    %731 = vrot.lane.b32.xlu0 %v382, 40
    %v732 = vpop.permute.xlu0 %731
    %733 = vrot.lane.b32.xlu0 %v383, 40
    %v734 = vpop.permute.xlu0 %733
    %735 = vrot.lane.b32.xlu0 %v384, 40
    %v736 = vpop.permute.xlu0 %735
    %737 = vrot.lane.b32.xlu0 %v385, 40
    %v738 = vpop.permute.xlu0 %737
    %771 = vrot.lane.b32.xlu0 %v387, 48
    %v772 = vpop.permute.xlu0 %771
    %773 = vrot.lane.b32.xlu0 %v388, 48
    %v774 = vpop.permute.xlu0 %773
    %775 = vrot.lane.b32.xlu0 %v389, 48
    %v776 = vpop.permute.xlu0 %775
    %777 = vrot.lane.b32.xlu0 %v390, 48
    %v778 = vpop.permute.xlu0 %777
    %779 = vrot.lane.b32.xlu0 %v391, 48
    %v780 = vpop.permute.xlu0 %779
    %781 = vrot.lane.b32.xlu0 %v392, 48
    %v782 = vpop.permute.xlu0 %781
    %783 = vrot.lane.b32.xlu0 %v393, 48
    %v784 = vpop.permute.xlu0 %783
    %785 = vrot.lane.b32.xlu0 %v394, 48
    %v786 = vpop.permute.xlu0 %785
    %787 = vrot.lane.b32.xlu0 %v395, 48
    %v788 = vpop.permute.xlu0 %787
    %789 = vrot.lane.b32.xlu0 %v396, 48
    %v790 = vpop.permute.xlu0 %789
    %791 = vrot.lane.b32.xlu0 %v397, 48
    %v792 = vpop.permute.xlu0 %791
    %793 = vrot.lane.b32.xlu0 %v398, 48
    %v794 = vpop.permute.xlu0 %793
    %795 = vrot.lane.b32.xlu0 %v399, 48
    %v796 = vpop.permute.xlu0 %795
    %797 = vrot.lane.b32.xlu0 %v400, 48
    %v798 = vpop.permute.xlu0 %797
    %799 = vrot.lane.b32.xlu0 %v401, 48
    %v800 = vpop.permute.xlu0 %799
    %801 = vrot.lane.b32.xlu0 %v402, 48
    %v802 = vpop.permute.xlu0 %801
    %835 = vrot.lane.b32.xlu0 %v403, 56
    %v836 = vpop.permute.xlu0 %835
    %837 = vrot.lane.b32.xlu0 %v404, 56
    %v838 = vpop.permute.xlu0 %837
    %839 = vrot.lane.b32.xlu0 %v405, 56
    %v840 = vpop.permute.xlu0 %839
    %841 = vrot.lane.b32.xlu0 %v406, 56
    %v842 = vpop.permute.xlu0 %841
    %843 = vrot.lane.b32.xlu0 %v407, 56
    %v844 = vpop.permute.xlu0 %843
    %845 = vrot.lane.b32.xlu0 %v408, 56
    %v846 = vpop.permute.xlu0 %845
    %847 = vrot.lane.b32.xlu0 %v409, 56
    %v848 = vpop.permute.xlu0 %847
    %849 = vrot.lane.b32.xlu0 %v410, 56
    %v850 = vpop.permute.xlu0 %849
    %851 = vrot.lane.b32.xlu0 %v411, 56
    %v852 = vpop.permute.xlu0 %851
    %853 = vrot.lane.b32.xlu0 %v412, 56
    %v854 = vpop.permute.xlu0 %853
    %855 = vrot.lane.b32.xlu0 %v413, 56
    %v856 = vpop.permute.xlu0 %855
    %857 = vrot.lane.b32.xlu0 %v414, 56
    %v858 = vpop.permute.xlu0 %857
    %859 = vrot.lane.b32.xlu0 %v415, 56
    %v860 = vpop.permute.xlu0 %859
    %861 = vrot.lane.b32.xlu0 %v416, 56
    %v862 = vpop.permute.xlu0 %861
    %863 = vrot.lane.b32.xlu0 %v417, 56
    %v864 = vpop.permute.xlu0 %863
    %865 = vrot.lane.b32.xlu0 %v418, 56
    %v866 = vpop.permute.xlu0 %865
    %899 = vrot.lane.b32.xlu0 %v419, 64
    %v900 = vpop.permute.xlu0 %899
    %901 = vrot.lane.b32.xlu0 %v420, 64
    %v902 = vpop.permute.xlu0 %901
    %903 = vrot.lane.b32.xlu0 %v421, 64
    %v904 = vpop.permute.xlu0 %903
    %905 = vrot.lane.b32.xlu0 %v422, 64
    %v906 = vpop.permute.xlu0 %905
    %907 = vrot.lane.b32.xlu0 %v423, 64
    %v908 = vpop.permute.xlu0 %907
    %909 = vrot.lane.b32.xlu0 %v424, 64
    %v910 = vpop.permute.xlu0 %909
    %911 = vrot.lane.b32.xlu0 %v425, 64
    %v912 = vpop.permute.xlu0 %911
    %913 = vrot.lane.b32.xlu0 %v426, 64
    %v914 = vpop.permute.xlu0 %913
    %915 = vrot.lane.b32.xlu0 %v427, 64
    %v916 = vpop.permute.xlu0 %915
    %917 = vrot.lane.b32.xlu0 %v428, 64
    %v918 = vpop.permute.xlu0 %917
    %919 = vrot.lane.b32.xlu0 %v429, 64
    %v920 = vpop.permute.xlu0 %919
    %921 = vrot.lane.b32.xlu0 %v430, 64
    %v922 = vpop.permute.xlu0 %921
    %923 = vrot.lane.b32.xlu0 %v431, 64
    %v924 = vpop.permute.xlu0 %923
    %925 = vrot.lane.b32.xlu0 %v432, 64
    %v926 = vpop.permute.xlu0 %925
    %927 = vrot.lane.b32.xlu0 %v433, 64
    %v928 = vpop.permute.xlu0 %927
    %929 = vrot.lane.b32.xlu0 %v434, 64
    %v930 = vpop.permute.xlu0 %929
    %v947 = vsel %vm221, %v290, %v452
    %v948 = vsel %vm221, %v291, %v454
    %v949 = vsel %vm221, %v292, %v456
    %v950 = vsel %vm221, %v293, %v458
    %v951 = vsel %vm221, %v294, %v460
    %v952 = vsel %vm221, %v295, %v462
    %v953 = vsel %vm221, %v296, %v464
    %v954 = vsel %vm221, %v297, %v466
    %v955 = vsel %vm221, %v298, %v468
    %v956 = vsel %vm221, %v299, %v470
    %v957 = vsel %vm221, %v300, %v472
    %v958 = vsel %vm221, %v301, %v474
    %v959 = vsel %vm221, %v302, %v476
    %v960 = vsel %vm221, %v303, %v478
    %v961 = vsel %vm221, %v304, %v480
    %v962 = vsel %vm221, %v305, %v482
    %vm963 = vcmask 130048
    %v964 = vsel %vm963, %v947, %v516
    %v965 = vsel %vm963, %v948, %v518
    %v966 = vsel %vm963, %v949, %v520
    %v967 = vsel %vm963, %v950, %v522
    %v968 = vsel %vm963, %v951, %v524
    %v969 = vsel %vm963, %v952, %v526
    %v970 = vsel %vm963, %v953, %v528
    %v971 = vsel %vm963, %v954, %v530
    %v972 = vsel %vm963, %v955, %v532
    %v973 = vsel %vm963, %v956, %v534
    %v974 = vsel %vm963, %v957, %v536
    %v975 = vsel %vm963, %v958, %v538
    %v976 = vsel %vm963, %v959, %v540
    %v977 = vsel %vm963, %v960, %v542
    %v978 = vsel %vm963, %v961, %v544
    %v979 = vsel %vm963, %v962, %v546
    %vm980 = vcmask 195584
    %v981 = vsel %vm980, %v964, %v580
    %v982 = vsel %vm980, %v965, %v582
    %v983 = vsel %vm980, %v966, %v584
    %v984 = vsel %vm980, %v967, %v586
    %v985 = vsel %vm980, %v968, %v588
    %v986 = vsel %vm980, %v969, %v590
    %v987 = vsel %vm980, %v970, %v592
    %v988 = vsel %vm980, %v971, %v594
    %v989 = vsel %vm980, %v972, %v596
    %v990 = vsel %vm980, %v973, %v598
    %v991 = vsel %vm980, %v974, %v600
    %v992 = vsel %vm980, %v975, %v602
    %v993 = vsel %vm980, %v976, %v604
    %v994 = vsel %vm980, %v977, %v606
    %v995 = vsel %vm980, %v978, %v608
    %v996 = vsel %vm980, %v979, %v610
    %vm997 = vcmask 261120
    %v998 = vsel %vm997, %v981, %v644
    %v999 = vsel %vm997, %v982, %v646
    %v1000 = vsel %vm997, %v983, %v648
    %v1001 = vsel %vm997, %v984, %v650
    %v1002 = vsel %vm997, %v985, %v652
    %v1003 = vsel %vm997, %v986, %v654
    %v1004 = vsel %vm997, %v987, %v656
    %v1005 = vsel %vm997, %v988, %v658
    %v1006 = vsel %vm997, %v989, %v660
    %v1007 = vsel %vm997, %v990, %v662
    %v1008 = vsel %vm997, %v991, %v664
    %v1009 = vsel %vm997, %v992, %v666
    %v1010 = vsel %vm997, %v993, %v668
    %v1011 = vsel %vm997, %v994, %v670
    %v1012 = vsel %vm997, %v995, %v672
    %v1013 = vsel %vm997, %v996, %v674
    %vm1014 = vcmask 326656
    %v1015 = vsel %vm1014, %v998, %v708
    %v1016 = vsel %vm1014, %v999, %v710
    %v1017 = vsel %vm1014, %v1000, %v712
    %v1018 = vsel %vm1014, %v1001, %v714
    %v1019 = vsel %vm1014, %v1002, %v716
    %v1020 = vsel %vm1014, %v1003, %v718
    %v1021 = vsel %vm1014, %v1004, %v720
    %v1022 = vsel %vm1014, %v1005, %v722
    %v1023 = vsel %vm1014, %v1006, %v724
    %v1024 = vsel %vm1014, %v1007, %v726
    %v1025 = vsel %vm1014, %v1008, %v728
    %v1026 = vsel %vm1014, %v1009, %v730
    %v1027 = vsel %vm1014, %v1010, %v732
    %v1028 = vsel %vm1014, %v1011, %v734
    %v1029 = vsel %vm1014, %v1012, %v736
    %v1030 = vsel %vm1014, %v1013, %v738
    %vm1031 = vcmask 392192
    %v1032 = vsel %vm1031, %v1015, %v772
    %v1033 = vsel %vm1031, %v1016, %v774
    %v1034 = vsel %vm1031, %v1017, %v776
    %v1035 = vsel %vm1031, %v1018, %v778
    %v1036 = vsel %vm1031, %v1019, %v780
    %v1037 = vsel %vm1031, %v1020, %v782
    %v1038 = vsel %vm1031, %v1021, %v784
    %v1039 = vsel %vm1031, %v1022, %v786
    %v1040 = vsel %vm1031, %v1023, %v788
    %v1041 = vsel %vm1031, %v1024, %v790
    %v1042 = vsel %vm1031, %v1025, %v792
    %v1043 = vsel %vm1031, %v1026, %v794
    %v1044 = vsel %vm1031, %v1027, %v796
    %v1045 = vsel %vm1031, %v1028, %v798
    %v1046 = vsel %vm1031, %v1029, %v800
    %v1047 = vsel %vm1031, %v1030, %v802
    %vm1048 = vcmask 457728
    %v1049 = vsel %vm1048, %v1032, %v836
    %v1050 = vsel %vm1048, %v1033, %v838
    %v1051 = vsel %vm1048, %v1034, %v840
    %v1052 = vsel %vm1048, %v1035, %v842
    %v1053 = vsel %vm1048, %v1036, %v844
    %v1054 = vsel %vm1048, %v1037, %v846
    %v1055 = vsel %vm1048, %v1038, %v848
    %v1056 = vsel %vm1048, %v1039, %v850
    %v1057 = vsel %vm1048, %v1040, %v852
    %v1058 = vsel %vm1048, %v1041, %v854
    %v1059 = vsel %vm1048, %v1042, %v856
    %v1060 = vsel %vm1048, %v1043, %v858
    %v1061 = vsel %vm1048, %v1044, %v860
    %v1062 = vsel %vm1048, %v1045, %v862
    %v1063 = vsel %vm1048, %v1046, %v864
    %v1064 = vsel %vm1048, %v1047, %v866
    %vm1065 = vcmask 523264
    %v1066 = vsel %vm1065, %v1049, %v900
    %v1067 = vsel %vm1065, %v1050, %v902
    %v1068 = vsel %vm1065, %v1051, %v904
    %v1069 = vsel %vm1065, %v1052, %v906
    %v1070 = vsel %vm1065, %v1053, %v908
    %v1071 = vsel %vm1065, %v1054, %v910
    %v1072 = vsel %vm1065, %v1055, %v912
    %v1073 = vsel %vm1065, %v1056, %v914
    %v1074 = vsel %vm1065, %v1057, %v916
    %v1075 = vsel %vm1065, %v1058, %v918
    %v1076 = vsel %vm1065, %v1059, %v920
    %v1077 = vsel %vm1065, %v1060, %v922
    %v1078 = vsel %vm1065, %v1061, %v924
    %v1079 = vsel %vm1065, %v1062, %v926
    %v1080 = vsel %vm1065, %v1063, %v928
    %v1081 = vsel %vm1065, %v1064, %v930
    %v1082 = vpack.c.bf16 %v1067, %v1066
    %v1083 = vpack.c.bf16 %v1069, %v1068
    %v1084 = vpack.c.bf16 %v1071, %v1070
    %v1085 = vpack.c.bf16 %v1073, %v1072
    %v1086 = vpack.c.bf16 %v1075, %v1074
    %v1087 = vpack.c.bf16 %v1077, %v1076
    %v1088 = vpack.c.bf16 %v1079, %v1078
    %v1089 = vpack.c.bf16 %v1081, %v1080
    %v1090 = vld [vmem:[%s1] sm:$0xf]
    %v1091 = vld [vmem:[%s1 + $0x4] sm:$0xf]
    %v1092 = vld [vmem:[%s1 + $0x8] sm:$0xf]
    %v1093 = vld [vmem:[%s1 + $0xc] sm:$0xf]
    %v1094 = vld [vmem:[%s1 + $0x10] sm:$0xf]
    %v1095 = vld [vmem:[%s1 + $0x14] sm:$0xf]
    %v1096 = vld [vmem:[%s1 + $0x18] sm:$0xf]
    %v1097 = vld [vmem:[%s1 + $0x1c] sm:$0xf]
    %v1098 = vld [vmem:[%s1 + $0x20] sm:$0xf]
    %v1099 = vld [vmem:[%s2] sm:$0x1]
    %v1101 = vlaneseq
    %v1102 = vshrl.u32 %v1101, 7
    %v1103 = vsub.s32 0, %v1102
    %v1104 = vrot.slane %v1099, %v1103
    %v1115 = vunpack.c.l.b16 %v1090
    %v1116 = vunpack.c.l.b16 %v1091
    %v1117 = vunpack.c.l.b16 %v1092
    %v1118 = vunpack.c.l.b16 %v1093
    %v1119 = vunpack.c.l.b16 %v1094
    %v1120 = vunpack.c.l.b16 %v1095
    %v1121 = vunpack.c.l.b16 %v1096
    %v1122 = vunpack.c.l.b16 %v1097
    %v1123 = vunpack.c.l.b16 %v1098
    %v1124 = vpack.c.b16 %v1116, %v1115
    %v1125 = vpack.c.b16 %v1118, %v1117
    %v1126 = vpack.c.b16 %v1120, %v1119
    %v1127 = vpack.c.b16 %v1122, %v1121
    %v1128 = vpack.c.b16 %v1123, %v1123
    %vm1133 = vcmask 588800
    %v1135 = vsel %vm1133, %v1082, 0
    %v1138 = vsel %vm1133, %v1083, 0
    %v1141 = vsel %vm1133, %v1084, 0
    %v1144 = vsel %vm1133, %v1085, 0
    %v1147 = vsel %vm1133, %v1086, 0
    %v1150 = vsel %vm1133, %v1087, 0
    %v1153 = vsel %vm1133, %v1088, 0
    %v1156 = vsel %vm1133, %v1089, 0
    %vm1158 = vcmask 1043456
    %v1160 = vsel %vm1158, %v1128, 0
    %1162 = vmatprep.subr.bf16.mxu0 0
    %1163 = vmatpush1.bf16.msra.mxu0 %v1124
    %1164 = vmatprep.subr.bf16.mxu0 0
    %1165 = vmatpush1.bf16.msra.mxu0 %v1125
    %1166 = vmatprep.subr.bf16.mxu0 0
    %1167 = vmatpush1.bf16.msra.mxu0 %v1126
    %1168 = vmatprep.subr.bf16.mxu0 0
    %1169 = vmatpush1.bf16.msra.mxu0 %v1127
    %1170 = vmatprep.subr.bf16.mxu0 0
    %1171 = vmatpush1.bf16.msra.mxu0 %v1160
    %1172 = vmatprep.subr.bf16.mxu0 0
    %1173 = vmatpush1.bf16.msra.mxu0 0
    %1174 = vmatprep.subr.bf16.mxu0 0
    %1175 = vmatpush1.bf16.msra.mxu0 0
    %1176 = vmatprep.subr.bf16.mxu0 0
    %1177 = vmatpush1.bf16.msra.mxu0 0
    %1178 = vmatprep.subr.bf16.mxu0 0
    %1179 = vmatpush1.bf16.msra.mxu0 0
    %1180 = vmatprep.subr.bf16.mxu0 0
    %1181 = vmatpush1.bf16.msra.mxu0 0
    %1182 = vmatprep.subr.bf16.mxu0 0
    %1183 = vmatpush1.bf16.msra.mxu0 0
    %1184 = vmatprep.subr.bf16.mxu0 0
    %1185 = vmatpush1.bf16.msra.mxu0 0
    %1186 = vmatprep.subr.bf16.mxu0 0
    %1187 = vmatpush1.bf16.msra.mxu0 0
    %1188 = vmatprep.subr.bf16.mxu0 0
    %1189 = vmatpush1.bf16.msra.mxu0 0
    %1190 = vmatprep.subr.bf16.mxu0 0
    %1191 = vmatpush1.bf16.msra.mxu0 0
    %1192 = vmatprep.subr.bf16.mxu0 0
    %1193 = vmatpush1.bf16.msra.mxu0 0
    %1194 = vmatprep.mubr.bf16.mxu0 0
    %1195 = vmatmul.mubr.bf16.gmra.mrb[0].mxu0 %v1135
    %v1196 = vpop.f32.mrb[0].mxu0
    %v1197 = vadd.f32 %v1104, %v1196
    %v1198 = vpop.f32.mrb[0].mxu0
    %v1199 = vpop.f32.mrb[0].mxu0
    %v1200 = vadd.f32 %v1104, %v1199
    %v1201 = vpop.f32.mrb[0].mxu0
    %1202 = vmatprep.mubr.bf16.mxu0 0
    %1203 = vmatmul.mubr.bf16.gmra.mrb[0].mxu0 %v1138
    %v1204 = vpop.f32.mrb[0].mxu0
    %v1205 = vadd.f32 %v1104, %v1204
    %v1206 = vpop.f32.mrb[0].mxu0
    %v1207 = vpop.f32.mrb[0].mxu0
    %v1208 = vadd.f32 %v1104, %v1207
    %v1209 = vpop.f32.mrb[0].mxu0
    %1210 = vmatprep.mubr.bf16.mxu0 0
    %1211 = vmatmul.mubr.bf16.gmra.mrb[0].mxu0 %v1141
    %v1212 = vpop.f32.mrb[0].mxu0
    %v1213 = vadd.f32 %v1104, %v1212
    %v1214 = vpop.f32.mrb[0].mxu0
    %v1215 = vpop.f32.mrb[0].mxu0
    %v1216 = vadd.f32 %v1104, %v1215
    %v1217 = vpop.f32.mrb[0].mxu0
    %1218 = vmatprep.mubr.bf16.mxu0 0
    %1219 = vmatmul.mubr.bf16.gmra.mrb[0].mxu0 %v1144
    %v1220 = vpop.f32.mrb[0].mxu0
    %v1221 = vadd.f32 %v1104, %v1220
    %v1222 = vpop.f32.mrb[0].mxu0
    %v1223 = vpop.f32.mrb[0].mxu0
    %v1224 = vadd.f32 %v1104, %v1223
    %v1225 = vpop.f32.mrb[0].mxu0
    %1226 = vmatprep.mubr.bf16.mxu0 0
    %1227 = vmatmul.mubr.bf16.gmra.mrb[0].mxu0 %v1147
    %v1228 = vpop.f32.mrb[0].mxu0
    %v1229 = vadd.f32 %v1104, %v1228
    %v1230 = vpop.f32.mrb[0].mxu0
    %v1231 = vpop.f32.mrb[0].mxu0
    %v1232 = vadd.f32 %v1104, %v1231
    %v1233 = vpop.f32.mrb[0].mxu0
    %1234 = vmatprep.mubr.bf16.mxu0 0
    %1235 = vmatmul.mubr.bf16.gmra.mrb[0].mxu0 %v1150
    %v1236 = vpop.f32.mrb[0].mxu0
    %v1237 = vadd.f32 %v1104, %v1236
    %v1238 = vpop.f32.mrb[0].mxu0
    %v1239 = vpop.f32.mrb[0].mxu0
    %v1240 = vadd.f32 %v1104, %v1239
    %v1241 = vpop.f32.mrb[0].mxu0
    %1242 = vmatprep.mubr.bf16.mxu0 0
    %1243 = vmatmul.mubr.bf16.gmra.mrb[0].mxu0 %v1153
    %v1244 = vpop.f32.mrb[0].mxu0
    %v1245 = vadd.f32 %v1104, %v1244
    %v1246 = vpop.f32.mrb[0].mxu0
    %v1247 = vpop.f32.mrb[0].mxu0
    %v1248 = vadd.f32 %v1104, %v1247
    %v1249 = vpop.f32.mrb[0].mxu0
    %1250 = vmatprep.mubr.bf16.mxu0 0
    %1251 = vmatmul.mubr.bf16.gmra.mrb[0].mxu0 %v1156
    %v1252 = vpop.f32.mrb[0].mxu0
    %v1253 = vadd.f32 %v1104, %v1252
    %v1254 = vpop.f32.mrb[0].mxu0
    %v1255 = vpop.f32.mrb[0].mxu0
    %v1256 = vadd.f32 %v1104, %v1255
    %v1257 = vpop.f32.mrb[0].mxu0
    %1258 = vdwg.mxu0
    %v1259 = vmax.f32 %v1197, 0.0
    %v1260 = vmax.f32 %v1200, 0.0
    %v1261 = vmax.f32 %v1205, 0.0
    %v1262 = vmax.f32 %v1208, 0.0
    %v1263 = vmax.f32 %v1213, 0.0
    %v1264 = vmax.f32 %v1216, 0.0
    %v1265 = vmax.f32 %v1221, 0.0
    %v1266 = vmax.f32 %v1224, 0.0
    %v1267 = vmax.f32 %v1229, 0.0
    %v1268 = vmax.f32 %v1232, 0.0
    %v1269 = vmax.f32 %v1237, 0.0
    %v1270 = vmax.f32 %v1240, 0.0
    %v1271 = vmax.f32 %v1245, 0.0
    %v1272 = vmax.f32 %v1248, 0.0
    %v1273 = vmax.f32 %v1253, 0.0
    %v1274 = vmax.f32 %v1256, 0.0
    %vm1275 = vcmask 31744
    %v1276 = vsel %vm1275, %v1259, 0.0
    %v1277 = vsel %vm1275, %v1260, 0.0
    %v1278 = vadd.f32 %v1276, %v1277
    %v1279 = vsel %vm1275, %v1261, 0.0
    %v1280 = vadd.f32 %v1278, %v1279
    %v1281 = vsel %vm1275, %v1262, 0.0
    %v1282 = vadd.f32 %v1280, %v1281
    %v1283 = vsel %vm1275, %v1263, 0.0
    %v1284 = vadd.f32 %v1282, %v1283
    %v1285 = vsel %vm1275, %v1264, 0.0
    %v1286 = vadd.f32 %v1284, %v1285
    %v1287 = vsel %vm1275, %v1265, 0.0
    %v1288 = vadd.f32 %v1286, %v1287
    %v1289 = vsel %vm1275, %v1266, 0.0
    %v1290 = vadd.f32 %v1288, %v1289
    %v1291 = vsel %vm1275, %v1267, 0.0
    %v1292 = vadd.f32 %v1290, %v1291
    %v1293 = vsel %vm1275, %v1268, 0.0
    %v1294 = vadd.f32 %v1292, %v1293
    %v1295 = vsel %vm1275, %v1269, 0.0
    %v1296 = vadd.f32 %v1294, %v1295
    %v1297 = vsel %vm1275, %v1270, 0.0
    %v1298 = vadd.f32 %v1296, %v1297
    %v1299 = vsel %vm1275, %v1271, 0.0
    %v1300 = vadd.f32 %v1298, %v1299
    %v1301 = vsel %vm1275, %v1272, 0.0
    %v1302 = vadd.f32 %v1300, %v1301
    %v1303 = vsel %vm1275, %v1273, 0.0
    %v1304 = vadd.f32 %v1302, %v1303
    %v1305 = vsel %vm1275, %v1274, 0.0
    %v1306 = vadd.f32 %v1304, %v1305
    %v1307 = vrot.slane %v1306, 4
    %v1308 = vadd.f32 %v1306, %v1307
    %v1309 = vrot.slane %v1308, 2
    %v1310 = vadd.f32 %v1308, %v1309
    %v1311 = vrot.slane %v1310, 1
    %v1312 = vadd.f32 %v1310, %v1311
    %v1313 = vmul.f32 %v1259, %v1259
    %v1314 = vmul.f32 %v1260, %v1260
    %v1315 = vmul.f32 %v1261, %v1261
    %v1316 = vmul.f32 %v1262, %v1262
    %v1317 = vmul.f32 %v1263, %v1263
    %v1318 = vmul.f32 %v1264, %v1264
    %v1319 = vmul.f32 %v1265, %v1265
    %v1320 = vmul.f32 %v1266, %v1266
    %v1321 = vmul.f32 %v1267, %v1267
    %v1322 = vmul.f32 %v1268, %v1268
    %v1323 = vmul.f32 %v1269, %v1269
    %v1324 = vmul.f32 %v1270, %v1270
    %v1325 = vmul.f32 %v1271, %v1271
    %v1326 = vmul.f32 %v1272, %v1272
    %v1327 = vmul.f32 %v1273, %v1273
    %v1328 = vmul.f32 %v1274, %v1274
    %v1329 = vsel %vm1275, %v1313, 0.0
    %v1330 = vsel %vm1275, %v1314, 0.0
    %v1331 = vadd.f32 %v1329, %v1330
    %v1332 = vsel %vm1275, %v1315, 0.0
    %v1333 = vadd.f32 %v1331, %v1332
    %v1334 = vsel %vm1275, %v1316, 0.0
    %v1335 = vadd.f32 %v1333, %v1334
    %v1336 = vsel %vm1275, %v1317, 0.0
    %v1337 = vadd.f32 %v1335, %v1336
    %v1338 = vsel %vm1275, %v1318, 0.0
    %v1339 = vadd.f32 %v1337, %v1338
    %v1340 = vsel %vm1275, %v1319, 0.0
    %v1341 = vadd.f32 %v1339, %v1340
    %v1342 = vsel %vm1275, %v1320, 0.0
    %v1343 = vadd.f32 %v1341, %v1342
    %v1344 = vsel %vm1275, %v1321, 0.0
    %v1345 = vadd.f32 %v1343, %v1344
    %v1346 = vsel %vm1275, %v1322, 0.0
    %v1347 = vadd.f32 %v1345, %v1346
    %v1348 = vsel %vm1275, %v1323, 0.0
    %v1349 = vadd.f32 %v1347, %v1348
    %v1350 = vsel %vm1275, %v1324, 0.0
    %v1351 = vadd.f32 %v1349, %v1350
    %v1352 = vsel %vm1275, %v1325, 0.0
    %v1353 = vadd.f32 %v1351, %v1352
    %v1354 = vsel %vm1275, %v1326, 0.0
    %v1355 = vadd.f32 %v1353, %v1354
    %v1356 = vsel %vm1275, %v1327, 0.0
    %v1357 = vadd.f32 %v1355, %v1356
    %v1358 = vsel %vm1275, %v1328, 0.0
    %v1359 = vadd.f32 %v1357, %v1358
    %v1360 = vrot.slane %v1359, 4
    %v1361 = vadd.f32 %v1359, %v1360
    %v1362 = vrot.slane %v1361, 2
    %v1363 = vadd.f32 %v1361, %v1362
    %v1364 = vrot.slane %v1363, 1
    %v1365 = vadd.f32 %v1363, %v1364
    %v1366 = vmul.f32 %v1312, 0.0078125
    %v1367 = vmul.f32 %v1365, 0.0078125
    %v1368 = vmul.f32 %v1366, %v1366
    %v1369 = vsub.f32 %v1367, %v1368
    %v1370 = vmax.f32 %v1369, 0.0
    %v1371 = vsub.f32 %v1259, %v1366
    %v1372 = vsub.f32 %v1260, %v1366
    %v1373 = vsub.f32 %v1261, %v1366
    %v1374 = vsub.f32 %v1262, %v1366
    %v1375 = vsub.f32 %v1263, %v1366
    %v1376 = vsub.f32 %v1264, %v1366
    %v1377 = vsub.f32 %v1265, %v1366
    %v1378 = vsub.f32 %v1266, %v1366
    %v1379 = vsub.f32 %v1267, %v1366
    %v1380 = vsub.f32 %v1268, %v1366
    %v1381 = vsub.f32 %v1269, %v1366
    %v1382 = vsub.f32 %v1270, %v1366
    %v1383 = vsub.f32 %v1271, %v1366
    %v1384 = vsub.f32 %v1272, %v1366
    %v1385 = vsub.f32 %v1273, %v1366
    %v1386 = vsub.f32 %v1274, %v1366
    %v1387 = vadd.f32 %v1370, 1e-05
    %v1388 = vrsqrt.pop %v1387
    %v1389 = vmul.f32 %v1371, %v1388
    %v1390 = vmul.f32 %v1372, %v1388
    %v1391 = vmul.f32 %v1373, %v1388
    %v1392 = vmul.f32 %v1374, %v1388
    %v1393 = vmul.f32 %v1375, %v1388
    %v1394 = vmul.f32 %v1376, %v1388
    %v1395 = vmul.f32 %v1377, %v1388
    %v1396 = vmul.f32 %v1378, %v1388
    %v1397 = vmul.f32 %v1379, %v1388
    %v1398 = vmul.f32 %v1380, %v1388
    %v1399 = vmul.f32 %v1381, %v1388
    %v1400 = vmul.f32 %v1382, %v1388
    %v1401 = vmul.f32 %v1383, %v1388
    %v1402 = vmul.f32 %v1384, %v1388
    %v1403 = vmul.f32 %v1385, %v1388
    %v1404 = vmul.f32 %v1386, %v1388
    %v1405 = vld [vmem:[%s3] sm:$0x1]
    %v1407 = vlaneseq
    %v1408 = vshrl.u32 %v1407, 7
    %v1409 = vsub.s32 0, %v1408
    %v1410 = vrot.slane %v1405, %v1409
    %v1412 = vmul.f32 %v1389, %v1410
    %v1413 = vmul.f32 %v1390, %v1410
    %v1414 = vmul.f32 %v1391, %v1410
    %v1415 = vmul.f32 %v1392, %v1410
    %v1416 = vmul.f32 %v1393, %v1410
    %v1417 = vmul.f32 %v1394, %v1410
    %v1418 = vmul.f32 %v1395, %v1410
    %v1419 = vmul.f32 %v1396, %v1410
    %v1420 = vmul.f32 %v1397, %v1410
    %v1421 = vmul.f32 %v1398, %v1410
    %v1422 = vmul.f32 %v1399, %v1410
    %v1423 = vmul.f32 %v1400, %v1410
    %v1424 = vmul.f32 %v1401, %v1410
    %v1425 = vmul.f32 %v1402, %v1410
    %v1426 = vmul.f32 %v1403, %v1410
    %v1427 = vmul.f32 %v1404, %v1410
    %v1428 = vld [vmem:[%s4] sm:$0x1]
    %v1430 = vlaneseq
    %v1431 = vshrl.u32 %v1430, 7
    %v1432 = vsub.s32 0, %v1431
    %v1433 = vrot.slane %v1428, %v1432
    %v1435 = vadd.f32 %v1412, %v1433
    %v1436 = vadd.f32 %v1413, %v1433
    %v1437 = vadd.f32 %v1414, %v1433
    %v1438 = vadd.f32 %v1415, %v1433
    %v1439 = vadd.f32 %v1416, %v1433
    %v1440 = vadd.f32 %v1417, %v1433
    %v1441 = vadd.f32 %v1418, %v1433
    %v1442 = vadd.f32 %v1419, %v1433
    %v1443 = vadd.f32 %v1420, %v1433
    %v1444 = vadd.f32 %v1421, %v1433
    %v1445 = vadd.f32 %v1422, %v1433
    %v1446 = vadd.f32 %v1423, %v1433
    %v1447 = vadd.f32 %v1424, %v1433
    %v1448 = vadd.f32 %v1425, %v1433
    %v1449 = vadd.f32 %v1426, %v1433
    %v1450 = vadd.f32 %v1427, %v1433
    %1451 = vst.msk [vmem:[#allocation3] sm:$0xff] %vm1275, %v1435
    %1452 = vst.msk [vmem:[#allocation3 + $0x8] sm:$0xff] %vm1275, %v1436
    %1453 = vst.msk [vmem:[#allocation3 + $0x10] sm:$0xff] %vm1275, %v1437
    %1454 = vst.msk [vmem:[#allocation3 + $0x18] sm:$0xff] %vm1275, %v1438
    %1455 = vst.msk [vmem:[#allocation3 + $0x20] sm:$0xff] %vm1275, %v1439
    %1456 = vst.msk [vmem:[#allocation3 + $0x28] sm:$0xff] %vm1275, %v1440
    %1457 = vst.msk [vmem:[#allocation3 + $0x30] sm:$0xff] %vm1275, %v1441
    %1458 = vst.msk [vmem:[#allocation3 + $0x38] sm:$0xff] %vm1275, %v1442
    %1459 = vst.msk [vmem:[#allocation3 + $0x40] sm:$0xff] %vm1275, %v1443
    %1460 = vst.msk [vmem:[#allocation3 + $0x48] sm:$0xff] %vm1275, %v1444
    %1461 = vst.msk [vmem:[#allocation3 + $0x50] sm:$0xff] %vm1275, %v1445
    %1462 = vst.msk [vmem:[#allocation3 + $0x58] sm:$0xff] %vm1275, %v1446
    %1463 = vst.msk [vmem:[#allocation3 + $0x60] sm:$0xff] %vm1275, %v1447
    %1464 = vst.msk [vmem:[#allocation3 + $0x68] sm:$0xff] %vm1275, %v1448
    %1465 = vst.msk [vmem:[#allocation3 + $0x70] sm:$0xff] %vm1275, %v1449
    %1466 = vst.msk [vmem:[#allocation3 + $0x78] sm:$0xff] %vm1275, %v1450
    %v1467 = vld [vmem:[#allocation3] ss:$2 sm:$0xf]
    %s1468 = scalar_lea.vmem [#allocation3], 16
    %v1469 = vld [vmem:[%s1468] ss:$2 sm:$0xf]
    %s1470 = scalar_lea.vmem [#allocation3], 32
    %v1471 = vld [vmem:[%s1470] ss:$2 sm:$0xf]
    %s1472 = scalar_lea.vmem [#allocation3], 48
    %v1473 = vld [vmem:[%s1472] ss:$2 sm:$0xf]
    %s1474 = scalar_lea.vmem [#allocation3], 64
    %v1475 = vld [vmem:[%s1474] ss:$2 sm:$0xf]
    %s1476 = scalar_lea.vmem [#allocation3], 80
    %v1477 = vld [vmem:[%s1476] ss:$2 sm:$0xf]
    %s1478 = scalar_lea.vmem [#allocation3], 96
    %v1479 = vld [vmem:[%s1478] ss:$2 sm:$0xf]
    %s1480 = scalar_lea.vmem [#allocation3], 112
    %v1481 = vld [vmem:[%s1480] ss:$2 sm:$0xf]
    %s1482 = scalar_lea.vmem [#allocation3], 1
    %v1483 = vld [vmem:[%s1482] ss:$2 sm:$0xf]
    %s1484 = scalar_lea.vmem [#allocation3], 17
    %v1485 = vld [vmem:[%s1484] ss:$2 sm:$0xf]
    %s1486 = scalar_lea.vmem [#allocation3], 33
    %v1487 = vld [vmem:[%s1486] ss:$2 sm:$0xf]
    %s1488 = scalar_lea.vmem [#allocation3], 49
    %v1489 = vld [vmem:[%s1488] ss:$2 sm:$0xf]
    %s1490 = scalar_lea.vmem [#allocation3], 65
    %v1491 = vld [vmem:[%s1490] ss:$2 sm:$0xf]
    %s1492 = scalar_lea.vmem [#allocation3], 81
    %v1493 = vld [vmem:[%s1492] ss:$2 sm:$0xf]
    %s1494 = scalar_lea.vmem [#allocation3], 97
    %v1495 = vld [vmem:[%s1494] ss:$2 sm:$0xf]
    %s1496 = scalar_lea.vmem [#allocation3], 113
    %v1497 = vld [vmem:[%s1496] ss:$2 sm:$0xf]
    %s1498 = scalar_lea.vmem [#allocation3], 8
    %v1499 = vld [vmem:[%s1498] ss:$2 sm:$0xf]
    %s1500 = scalar_lea.vmem %s1498, 16 [#allocation3]
    %v1501 = vld [vmem:[%s1500] ss:$2 sm:$0xf]
    %s1502 = scalar_lea.vmem %s1498, 32 [#allocation3]
    %v1503 = vld [vmem:[%s1502] ss:$2 sm:$0xf]
    %s1504 = scalar_lea.vmem %s1498, 48 [#allocation3]
    %v1505 = vld [vmem:[%s1504] ss:$2 sm:$0xf]
    %s1506 = scalar_lea.vmem %s1498, 64 [#allocation3]
    %v1507 = vld [vmem:[%s1506] ss:$2 sm:$0xf]
    %s1508 = scalar_lea.vmem %s1498, 80 [#allocation3]
    %v1509 = vld [vmem:[%s1508] ss:$2 sm:$0xf]
    %s1510 = scalar_lea.vmem %s1498, 96 [#allocation3]
    %v1511 = vld [vmem:[%s1510] ss:$2 sm:$0xf]
    %s1512 = scalar_lea.vmem %s1498, 112 [#allocation3]
    %v1513 = vld [vmem:[%s1512] ss:$2 sm:$0xf]
    %s1514 = scalar_lea.vmem %s1498, 1 [#allocation3]
    %v1515 = vld [vmem:[%s1514] ss:$2 sm:$0xf]
    %s1516 = scalar_lea.vmem %s1498, 17 [#allocation3]
    %v1517 = vld [vmem:[%s1516] ss:$2 sm:$0xf]
    %s1518 = scalar_lea.vmem %s1498, 33 [#allocation3]
    %v1519 = vld [vmem:[%s1518] ss:$2 sm:$0xf]
    %s1520 = scalar_lea.vmem %s1498, 49 [#allocation3]
    %v1521 = vld [vmem:[%s1520] ss:$2 sm:$0xf]
    %s1522 = scalar_lea.vmem %s1498, 65 [#allocation3]
    %v1523 = vld [vmem:[%s1522] ss:$2 sm:$0xf]
    %s1524 = scalar_lea.vmem %s1498, 81 [#allocation3]
    %v1525 = vld [vmem:[%s1524] ss:$2 sm:$0xf]
    %s1526 = scalar_lea.vmem %s1498, 97 [#allocation3]
    %v1527 = vld [vmem:[%s1526] ss:$2 sm:$0xf]
    %s1528 = scalar_lea.vmem %s1498, 113 [#allocation3]
    %v1529 = vld [vmem:[%s1528] ss:$2 sm:$0xf]
    %v1530 = vmax.f32 %v1467, %v1483
    %v1531 = vmax.f32 %v1469, %v1485
    %v1532 = vmax.f32 %v1471, %v1487
    %v1533 = vmax.f32 %v1473, %v1489
    %v1534 = vmax.f32 %v1475, %v1491
    %v1535 = vmax.f32 %v1477, %v1493
    %v1536 = vmax.f32 %v1479, %v1495
    %v1537 = vmax.f32 %v1481, %v1497
    %v1538 = vmax.f32 %v1499, %v1515
    %v1539 = vmax.f32 %v1501, %v1517
    %v1540 = vmax.f32 %v1503, %v1519
    %v1541 = vmax.f32 %v1505, %v1521
    %v1542 = vmax.f32 %v1507, %v1523
    %v1543 = vmax.f32 %v1509, %v1525
    %v1544 = vmax.f32 %v1511, %v1527
    %v1545 = vmax.f32 %v1513, %v1529
    %v1546 = vmax.f32 %v1530, %v1538
    %v1547 = vmax.f32 %v1531, %v1539
    %v1548 = vmax.f32 %v1532, %v1540
    %v1549 = vmax.f32 %v1533, %v1541
    %v1550 = vmax.f32 %v1534, %v1542
    %v1551 = vmax.f32 %v1535, %v1543
    %v1552 = vmax.f32 %v1536, %v1544
    %v1553 = vmax.f32 %v1537, %v1545
    %vm1554 = vcmask 29696
    %1555 = vst.msk [vmem:[#allocation4] sm:$0x3f] %vm1554, 0.0
    %1556 = vst.msk [vmem:[#allocation4 + $0x30] sm:$0x3f] %vm1554, 0.0
    %s1557 = scalar_lea.vmem [#allocation4], 40
    %1558 = vst.msk [vmem:[%s1557] sm:$0x3f] %vm1554, 0.0
    %1559 = vst.msk [vmem:[%s1557 + $0x30] sm:$0x3f] %vm1554, 0.0
    %vm1560 = vcmask 24576
    %1561 = vst.msk [vmem:[#allocation4] sm:$0x1] %vm1560, 0.0
    %1562 = vst.msk [vmem:[#allocation4 + $0x8] sm:$0x1] %vm1560, 0.0
    %1563 = vst.msk [vmem:[#allocation4 + $0x10] sm:$0x1] %vm1560, 0.0
    %1564 = vst.msk [vmem:[#allocation4 + $0x18] sm:$0x1] %vm1560, 0.0
    %1565 = vst.msk [vmem:[#allocation4 + $0x20] sm:$0x1] %vm1560, 0.0
    %1566 = vst.msk [vmem:[#allocation4 + $0x28] sm:$0x1] %vm1560, 0.0
    %1567 = vst.msk [vmem:[#allocation4 + $0x30] sm:$0x1] %vm1560, 0.0
    %1568 = vst.msk [vmem:[#allocation4 + $0x38] sm:$0x1] %vm1560, 0.0
    %1569 = vst.msk [vmem:[#allocation4 + $0x40] sm:$0x1] %vm1560, 0.0
    %1570 = vst.msk [vmem:[#allocation4 + $0x48] sm:$0x1] %vm1560, 0.0
    %1571 = vst.msk [vmem:[#allocation4 + $0x50] sm:$0x1] %vm1560, 0.0
    %1572 = vst.msk [vmem:[#allocation4 + $0x58] sm:$0x1] %vm1560, 0.0
    %1573 = vst.msk [vmem:[#allocation4 + $0x5] sm:$0x1] %vm1560, 0.0
    %1574 = vst.msk [vmem:[#allocation4 + $0xd] sm:$0x1] %vm1560, 0.0
    %1575 = vst.msk [vmem:[#allocation4 + $0x15] sm:$0x1] %vm1560, 0.0
    %1576 = vst.msk [vmem:[#allocation4 + $0x1d] sm:$0x1] %vm1560, 0.0
    %1577 = vst.msk [vmem:[#allocation4 + $0x25] sm:$0x1] %vm1560, 0.0
    %1578 = vst.msk [vmem:[#allocation4 + $0x2d] sm:$0x1] %vm1560, 0.0
    %1579 = vst.msk [vmem:[#allocation4 + $0x35] sm:$0x1] %vm1560, 0.0
    %1580 = vst.msk [vmem:[#allocation4 + $0x3d] sm:$0x1] %vm1560, 0.0
    %1581 = vst.msk [vmem:[#allocation4 + $0x45] sm:$0x1] %vm1560, 0.0
    %1582 = vst.msk [vmem:[#allocation4 + $0x4d] sm:$0x1] %vm1560, 0.0
    %1583 = vst.msk [vmem:[#allocation4 + $0x55] sm:$0x1] %vm1560, 0.0
    %1584 = vst.msk [vmem:[#allocation4 + $0x5d] sm:$0x1] %vm1560, 0.0
    %s1585 = scalar_lea.vmem [#allocation4], 8
    %vm1586 = vcmask 27648
    %1587 = vst.msk [vmem:[%s1585 + $0x1] sm:$0xf] %vm1586, %v1546
    %1588 = vst.msk [vmem:[%s1585 + $0x9] sm:$0xf] %vm1586, %v1547
    %1589 = vst.msk [vmem:[%s1585 + $0x11] sm:$0xf] %vm1586, %v1548
    %1590 = vst.msk [vmem:[%s1585 + $0x19] sm:$0xf] %vm1586, %v1549
    %1591 = vst.msk [vmem:[%s1585 + $0x31] sm:$0xf] %vm1586, %v1550
    %1592 = vst.msk [vmem:[%s1585 + $0x39] sm:$0xf] %vm1586, %v1551
    %1593 = vst.msk [vmem:[%s1585 + $0x41] sm:$0xf] %vm1586, %v1552
    %1594 = vst.msk [vmem:[%s1585 + $0x49] sm:$0xf] %vm1586, %v1553
    %v1595 = vld [vmem:[#allocation4] sm:$0xf]
    %v1596 = vld [vmem:[#allocation4 + $0x8] sm:$0xf]
    %v1597 = vld [vmem:[#allocation4 + $0x10] sm:$0xf]
    %v1598 = vld [vmem:[#allocation4 + $0x18] sm:$0xf]
    %v1599 = vld [vmem:[#allocation4 + $0x30] sm:$0xf]
    %v1600 = vld [vmem:[#allocation4 + $0x38] sm:$0xf]
    %v1601 = vld [vmem:[#allocation4 + $0x40] sm:$0xf]
    %v1602 = vld [vmem:[#allocation4 + $0x48] sm:$0xf]
    %v1603 = vld [vmem:[#allocation4 + $0x1] sm:$0xf]
    %v1604 = vld [vmem:[#allocation4 + $0x9] sm:$0xf]
    %v1605 = vld [vmem:[#allocation4 + $0x11] sm:$0xf]
    %v1606 = vld [vmem:[#allocation4 + $0x19] sm:$0xf]
    %v1607 = vld [vmem:[#allocation4 + $0x31] sm:$0xf]
    %v1608 = vld [vmem:[#allocation4 + $0x39] sm:$0xf]
    %v1609 = vld [vmem:[#allocation4 + $0x41] sm:$0xf]
    %v1610 = vld [vmem:[#allocation4 + $0x49] sm:$0xf]
    %v1611 = vld [vmem:[#allocation4 + $0x2] sm:$0xf]
    %v1612 = vld [vmem:[#allocation4 + $0xa] sm:$0xf]
    %v1613 = vld [vmem:[#allocation4 + $0x12] sm:$0xf]
    %v1614 = vld [vmem:[#allocation4 + $0x1a] sm:$0xf]
    %v1615 = vld [vmem:[#allocation4 + $0x32] sm:$0xf]
    %v1616 = vld [vmem:[#allocation4 + $0x3a] sm:$0xf]
    %v1617 = vld [vmem:[#allocation4 + $0x42] sm:$0xf]
    %v1618 = vld [vmem:[#allocation4 + $0x4a] sm:$0xf]
    %v1619 = vld [vmem:[%s1585] sm:$0xf]
    %v1620 = vld [vmem:[%s1585 + $0x8] sm:$0xf]
    %v1621 = vld [vmem:[%s1585 + $0x10] sm:$0xf]
    %v1622 = vld [vmem:[%s1585 + $0x18] sm:$0xf]
    %v1623 = vld [vmem:[%s1585 + $0x30] sm:$0xf]
    %v1624 = vld [vmem:[%s1585 + $0x38] sm:$0xf]
    %v1625 = vld [vmem:[%s1585 + $0x40] sm:$0xf]
    %v1626 = vld [vmem:[%s1585 + $0x48] sm:$0xf]
    %v1627 = vld [vmem:[%s1585 + $0x1] sm:$0xf]
    %v1628 = vld [vmem:[%s1585 + $0x9] sm:$0xf]
    %v1629 = vld [vmem:[%s1585 + $0x11] sm:$0xf]
    %v1630 = vld [vmem:[%s1585 + $0x19] sm:$0xf]
    %v1631 = vld [vmem:[%s1585 + $0x31] sm:$0xf]
    %v1632 = vld [vmem:[%s1585 + $0x39] sm:$0xf]
    %v1633 = vld [vmem:[%s1585 + $0x41] sm:$0xf]
    %v1634 = vld [vmem:[%s1585 + $0x49] sm:$0xf]
    %v1635 = vld [vmem:[%s1585 + $0x2] sm:$0xf]
    %v1636 = vld [vmem:[%s1585 + $0xa] sm:$0xf]
    %v1637 = vld [vmem:[%s1585 + $0x12] sm:$0xf]
    %v1638 = vld [vmem:[%s1585 + $0x1a] sm:$0xf]
    %v1639 = vld [vmem:[%s1585 + $0x32] sm:$0xf]
    %v1640 = vld [vmem:[%s1585 + $0x3a] sm:$0xf]
    %v1641 = vld [vmem:[%s1585 + $0x42] sm:$0xf]
    %v1642 = vld [vmem:[%s1585 + $0x4a] sm:$0xf]
    %s1643 = scalar_lea.vmem [#allocation4], 16
    %v1644 = vld [vmem:[%s1643] sm:$0xf]
    %v1645 = vld [vmem:[%s1643 + $0x8] sm:$0xf]
    %v1646 = vld [vmem:[%s1643 + $0x10] sm:$0xf]
    %v1647 = vld [vmem:[%s1643 + $0x18] sm:$0xf]
    %v1648 = vld [vmem:[%s1643 + $0x30] sm:$0xf]
    %v1649 = vld [vmem:[%s1643 + $0x38] sm:$0xf]
    %v1650 = vld [vmem:[%s1643 + $0x40] sm:$0xf]
    %v1651 = vld [vmem:[%s1643 + $0x48] sm:$0xf]
    %v1652 = vld [vmem:[%s1643 + $0x1] sm:$0xf]
    %v1653 = vld [vmem:[%s1643 + $0x9] sm:$0xf]
    %v1654 = vld [vmem:[%s1643 + $0x11] sm:$0xf]
    %v1655 = vld [vmem:[%s1643 + $0x19] sm:$0xf]
    %v1656 = vld [vmem:[%s1643 + $0x31] sm:$0xf]
    %v1657 = vld [vmem:[%s1643 + $0x39] sm:$0xf]
    %v1658 = vld [vmem:[%s1643 + $0x41] sm:$0xf]
    %v1659 = vld [vmem:[%s1643 + $0x49] sm:$0xf]
    %v1660 = vld [vmem:[%s1643 + $0x2] sm:$0xf]
    %v1661 = vld [vmem:[%s1643 + $0xa] sm:$0xf]
    %v1662 = vld [vmem:[%s1643 + $0x12] sm:$0xf]
    %v1663 = vld [vmem:[%s1643 + $0x1a] sm:$0xf]
    %v1664 = vld [vmem:[%s1643 + $0x32] sm:$0xf]
    %v1665 = vld [vmem:[%s1643 + $0x3a] sm:$0xf]
    %v1666 = vld [vmem:[%s1643 + $0x42] sm:$0xf]
    %v1667 = vld [vmem:[%s1643 + $0x4a] sm:$0xf]
    %v1676 = vcombine.low %v1595, %v1596
    %v1677 = vcombine.low %v1597, %v1598
    %v1678 = vcombine.low %v1599, %v1600
    %v1679 = vcombine.low %v1601, %v1602
    %v1692 = vcombine.low %v1603, %v1604
    %v1693 = vcombine.low %v1605, %v1606
    %v1694 = vcombine.low %v1607, %v1608
    %v1695 = vcombine.low %v1609, %v1610
    %1696 = vrot.lane.b32.xlu0 %v1692, 4
    %v1697 = vpop.permute.xlu0 %1696
    %1698 = vrot.lane.b32.xlu0 %v1693, 4
    %v1699 = vpop.permute.xlu0 %1698
    %1700 = vrot.lane.b32.xlu0 %v1694, 4
    %v1701 = vpop.permute.xlu0 %1700
    %1702 = vrot.lane.b32.xlu0 %v1695, 4
    %v1703 = vpop.permute.xlu0 %1702
    %v1716 = vcombine.low %v1611, %v1612
    %v1717 = vcombine.low %v1613, %v1614
    %v1718 = vcombine.low %v1615, %v1616
    %v1719 = vcombine.low %v1617, %v1618
    %1720 = vrot.lane.b32.xlu0 %v1716, 8
    %v1721 = vpop.permute.xlu0 %1720
    %1722 = vrot.lane.b32.xlu0 %v1717, 8
    %v1723 = vpop.permute.xlu0 %1722
    %1724 = vrot.lane.b32.xlu0 %v1718, 8
    %v1725 = vpop.permute.xlu0 %1724
    %1726 = vrot.lane.b32.xlu0 %v1719, 8
    %v1727 = vpop.permute.xlu0 %1726
    %v1740 = vcombine.low %v1619, %v1620
    %v1741 = vcombine.low %v1621, %v1622
    %v1742 = vcombine.low %v1623, %v1624
    %v1743 = vcombine.low %v1625, %v1626
    %1744 = vrot.lane.b32.xlu0 %v1740, 12
    %v1745 = vpop.permute.xlu0 %1744
    %1746 = vrot.lane.b32.xlu0 %v1741, 12
    %v1747 = vpop.permute.xlu0 %1746
    %1748 = vrot.lane.b32.xlu0 %v1742, 12
    %v1749 = vpop.permute.xlu0 %1748
    %1750 = vrot.lane.b32.xlu0 %v1743, 12
    %v1751 = vpop.permute.xlu0 %1750
    %v1764 = vcombine.low %v1627, %v1628
    %v1765 = vcombine.low %v1629, %v1630
    %v1766 = vcombine.low %v1631, %v1632
    %v1767 = vcombine.low %v1633, %v1634
    %1768 = vrot.lane.b32.xlu0 %v1764, 16
    %v1769 = vpop.permute.xlu0 %1768
    %1770 = vrot.lane.b32.xlu0 %v1765, 16
    %v1771 = vpop.permute.xlu0 %1770
    %1772 = vrot.lane.b32.xlu0 %v1766, 16
    %v1773 = vpop.permute.xlu0 %1772
    %1774 = vrot.lane.b32.xlu0 %v1767, 16
    %v1775 = vpop.permute.xlu0 %1774
    %v1788 = vcombine.low %v1635, %v1636
    %v1789 = vcombine.low %v1637, %v1638
    %v1790 = vcombine.low %v1639, %v1640
    %v1791 = vcombine.low %v1641, %v1642
    %1792 = vrot.lane.b32.xlu0 %v1788, 20
    %v1793 = vpop.permute.xlu0 %1792
    %1794 = vrot.lane.b32.xlu0 %v1789, 20
    %v1795 = vpop.permute.xlu0 %1794
    %1796 = vrot.lane.b32.xlu0 %v1790, 20
    %v1797 = vpop.permute.xlu0 %1796
    %1798 = vrot.lane.b32.xlu0 %v1791, 20
    %v1799 = vpop.permute.xlu0 %1798
    %v1812 = vcombine.low %v1644, %v1645
    %v1813 = vcombine.low %v1646, %v1647
    %v1814 = vcombine.low %v1648, %v1649
    %v1815 = vcombine.low %v1650, %v1651
    %1816 = vrot.lane.b32.xlu0 %v1812, 24
    %v1817 = vpop.permute.xlu0 %1816
    %1818 = vrot.lane.b32.xlu0 %v1813, 24
    %v1819 = vpop.permute.xlu0 %1818
    %1820 = vrot.lane.b32.xlu0 %v1814, 24
    %v1821 = vpop.permute.xlu0 %1820
    %1822 = vrot.lane.b32.xlu0 %v1815, 24
    %v1823 = vpop.permute.xlu0 %1822
    %v1836 = vcombine.low %v1652, %v1653
    %v1837 = vcombine.low %v1654, %v1655
    %v1838 = vcombine.low %v1656, %v1657
    %v1839 = vcombine.low %v1658, %v1659
    %1840 = vrot.lane.b32.xlu0 %v1836, 28
    %v1841 = vpop.permute.xlu0 %1840
    %1842 = vrot.lane.b32.xlu0 %v1837, 28
    %v1843 = vpop.permute.xlu0 %1842
    %1844 = vrot.lane.b32.xlu0 %v1838, 28
    %v1845 = vpop.permute.xlu0 %1844
    %1846 = vrot.lane.b32.xlu0 %v1839, 28
    %v1847 = vpop.permute.xlu0 %1846
    %v1860 = vcombine.low %v1660, %v1661
    %v1861 = vcombine.low %v1662, %v1663
    %v1862 = vcombine.low %v1664, %v1665
    %v1863 = vcombine.low %v1666, %v1667
    %1864 = vrot.lane.b32.xlu0 %v1860, 32
    %v1865 = vpop.permute.xlu0 %1864
    %1866 = vrot.lane.b32.xlu0 %v1861, 32
    %v1867 = vpop.permute.xlu0 %1866
    %1868 = vrot.lane.b32.xlu0 %v1862, 32
    %v1869 = vpop.permute.xlu0 %1868
    %1870 = vrot.lane.b32.xlu0 %v1863, 32
    %v1871 = vpop.permute.xlu0 %1870
    %v1876 = vsel %vm1275, %v1676, %v1697
    %v1877 = vsel %vm1275, %v1677, %v1699
    %v1878 = vsel %vm1275, %v1678, %v1701
    %v1879 = vsel %vm1275, %v1679, %v1703
    %v1880 = vsel %vm221, %v1876, %v1721
    %v1881 = vsel %vm221, %v1877, %v1723
    %v1882 = vsel %vm221, %v1878, %v1725
    %v1883 = vsel %vm221, %v1879, %v1727
    %vm1884 = vcmask 97280
    %v1885 = vsel %vm1884, %v1880, %v1745
    %v1886 = vsel %vm1884, %v1881, %v1747
    %v1887 = vsel %vm1884, %v1882, %v1749
    %v1888 = vsel %vm1884, %v1883, %v1751
    %v1889 = vsel %vm963, %v1885, %v1769
    %v1890 = vsel %vm963, %v1886, %v1771
    %v1891 = vsel %vm963, %v1887, %v1773
    %v1892 = vsel %vm963, %v1888, %v1775
    %vm1893 = vcmask 162816
    %v1894 = vsel %vm1893, %v1889, %v1793
    %v1895 = vsel %vm1893, %v1890, %v1795
    %v1896 = vsel %vm1893, %v1891, %v1797
    %v1897 = vsel %vm1893, %v1892, %v1799
    %v1898 = vsel %vm980, %v1894, %v1817
    %v1899 = vsel %vm980, %v1895, %v1819
    %v1900 = vsel %vm980, %v1896, %v1821
    %v1901 = vsel %vm980, %v1897, %v1823
    %vm1902 = vcmask 228352
    %v1903 = vsel %vm1902, %v1898, %v1841
    %v1904 = vsel %vm1902, %v1899, %v1843
    %v1905 = vsel %vm1902, %v1900, %v1845
    %v1906 = vsel %vm1902, %v1901, %v1847
    %v1907 = vsel %vm997, %v1903, %v1865
    %v1908 = vsel %vm997, %v1904, %v1867
    %v1909 = vsel %vm997, %v1905, %v1869
    %v1910 = vsel %vm997, %v1906, %v1871
    %v1911 = vpack.c.bf16 %v1908, %v1907
    %v1912 = vpack.c.bf16 %v1910, %v1909
    %v1913 = vld [vmem:[%s5] sm:$0xf]
    %v1914 = vld [vmem:[%s5 + $0x4] sm:$0xf]
    %v1915 = vld [vmem:[%s5 + $0x8] sm:$0xf]
    %v1916 = vld [vmem:[%s5 + $0xc] sm:$0xf]
    %v1917 = vld [vmem:[%s5 + $0x10] sm:$0x3]
    %v1918 = vld [vmem:[%s6] sm:$0x1]
    %v1920 = vlaneseq
    %v1921 = vshrl.u32 %v1920, 7
    %v1922 = vsub.s32 0, %v1921
    %v1923 = vrot.slane %v1918, %v1922
    %v1930 = vunpack.c.l.b16 %v1913
    %v1931 = vunpack.c.l.b16 %v1914
    %v1932 = vunpack.c.l.b16 %v1915
    %v1933 = vunpack.c.l.b16 %v1916
    %v1934 = vunpack.c.l.b16 %v1917
    %v1935 = vpack.c.b16 %v1931, %v1930
    %v1936 = vpack.c.b16 %v1933, %v1932
    %v1937 = vpack.c.b16 %v1934, %v1934
    %vm1940 = vcmask 293888
    %v1942 = vsel %vm1940, %v1911, 0
    %v1945 = vsel %vm1940, %v1912, 0
    %vm1947 = vcmask 1041408
    %v1949 = vsel %vm1947, %v1937, 0
    %1951 = vmatprep.subr.bf16.mxu0 0
    %1952 = vmatpush1.bf16.msra.mxu0 %v1935
    %1953 = vmatprep.subr.bf16.mxu0 0
    %1954 = vmatpush1.bf16.msra.mxu0 %v1936
    %1955 = vmatprep.subr.bf16.mxu0 0
    %1956 = vmatpush1.bf16.msra.mxu0 %v1949
    %1957 = vmatprep.subr.bf16.mxu0 0
    %1958 = vmatpush1.bf16.msra.mxu0 0
    %1959 = vmatprep.subr.bf16.mxu0 0
    %1960 = vmatpush1.bf16.msra.mxu0 0
    %1961 = vmatprep.subr.bf16.mxu0 0
    %1962 = vmatpush1.bf16.msra.mxu0 0
    %1963 = vmatprep.subr.bf16.mxu0 0
    %1964 = vmatpush1.bf16.msra.mxu0 0
    %1965 = vmatprep.subr.bf16.mxu0 0
    %1966 = vmatpush1.bf16.msra.mxu0 0
    %1967 = vmatprep.subr.bf16.mxu0 0
    %1968 = vmatpush1.bf16.msra.mxu0 0
    %1969 = vmatprep.subr.bf16.mxu0 0
    %1970 = vmatpush1.bf16.msra.mxu0 0
    %1971 = vmatprep.subr.bf16.mxu0 0
    %1972 = vmatpush1.bf16.msra.mxu0 0
    %1973 = vmatprep.subr.bf16.mxu0 0
    %1974 = vmatpush1.bf16.msra.mxu0 0
    %1975 = vmatprep.subr.bf16.mxu0 0
    %1976 = vmatpush1.bf16.msra.mxu0 0
    %1977 = vmatprep.subr.bf16.mxu0 0
    %1978 = vmatpush1.bf16.msra.mxu0 0
    %1979 = vmatprep.subr.bf16.mxu0 0
    %1980 = vmatpush1.bf16.msra.mxu0 0
    %1981 = vmatprep.subr.bf16.mxu0 0
    %1982 = vmatpush1.bf16.msra.mxu0 0
    %1983 = vmatprep.mubr.bf16.mxu0 0
    %1984 = vmatmul.mubr.bf16.gmra.mrb[0].mxu0 %v1942
    %v1985 = vpop.f32.mrb[0].mxu0
    %v1986 = vadd.f32 %v1923, %v1985
    %v1987 = vpop.f32.mrb[0].mxu0
    %v1988 = vpop.f32.mrb[0].mxu0
    %v1989 = vadd.f32 %v1923, %v1988
    %v1990 = vpop.f32.mrb[0].mxu0
    %1991 = vmatprep.mubr.bf16.mxu0 0
    %1992 = vmatmul.mubr.bf16.gmra.mrb[0].mxu0 %v1945
    %v1993 = vpop.f32.mrb[0].mxu0
    %v1994 = vadd.f32 %v1923, %v1993
    %v1995 = vpop.f32.mrb[0].mxu0
    %v1996 = vpop.f32.mrb[0].mxu0
    %v1997 = vadd.f32 %v1923, %v1996
    %v1998 = vpop.f32.mrb[0].mxu0
    %1999 = vdwg.mxu0
    %v2000 = vmax.f32 %v1986, 0.0
    %v2001 = vmax.f32 %v1989, 0.0
    %v2002 = vmax.f32 %v1994, 0.0
    %v2003 = vmax.f32 %v1997, 0.0
    %vm2004 = vcmask 15360
    %v2005 = vsel %vm2004, %v2000, 0.0
    %v2006 = vsel %vm2004, %v2001, 0.0
    %v2007 = vadd.f32 %v2005, %v2006
    %v2008 = vsel %vm2004, %v2002, 0.0
    %v2009 = vadd.f32 %v2007, %v2008
    %v2010 = vsel %vm2004, %v2003, 0.0
    %v2011 = vadd.f32 %v2009, %v2010
    %v2012 = vrot.slane %v2011, 4
    %v2013 = vadd.f32 %v2011, %v2012
    %v2014 = vrot.slane %v2013, 2
    %v2015 = vadd.f32 %v2013, %v2014
    %v2016 = vrot.slane %v2015, 1
    %v2017 = vadd.f32 %v2015, %v2016
    %v2018 = vmul.f32 %v2000, %v2000
    %v2019 = vmul.f32 %v2001, %v2001
    %v2020 = vmul.f32 %v2002, %v2002
    %v2021 = vmul.f32 %v2003, %v2003
    %v2022 = vsel %vm2004, %v2018, 0.0
    %v2023 = vsel %vm2004, %v2019, 0.0
    %v2024 = vadd.f32 %v2022, %v2023
    %v2025 = vsel %vm2004, %v2020, 0.0
    %v2026 = vadd.f32 %v2024, %v2025
    %v2027 = vsel %vm2004, %v2021, 0.0
    %v2028 = vadd.f32 %v2026, %v2027
    %v2029 = vrot.slane %v2028, 4
    %v2030 = vadd.f32 %v2028, %v2029
    %v2031 = vrot.slane %v2030, 2
    %v2032 = vadd.f32 %v2030, %v2031
    %v2033 = vrot.slane %v2032, 1
    %v2034 = vadd.f32 %v2032, %v2033
    %v2035 = vmul.f32 %v2017, 0.03125
    %v2036 = vmul.f32 %v2034, 0.03125
    %v2037 = vmul.f32 %v2035, %v2035
    %v2038 = vsub.f32 %v2036, %v2037
    %v2039 = vmax.f32 %v2038, 0.0
    %v2040 = vsub.f32 %v2000, %v2035
    %v2041 = vsub.f32 %v2001, %v2035
    %v2042 = vsub.f32 %v2002, %v2035
    %v2043 = vsub.f32 %v2003, %v2035
    %v2044 = vadd.f32 %v2039, 1e-05
    %v2045 = vrsqrt.pop %v2044
    %v2046 = vmul.f32 %v2040, %v2045
    %v2047 = vmul.f32 %v2041, %v2045
    %v2048 = vmul.f32 %v2042, %v2045
    %v2049 = vmul.f32 %v2043, %v2045
    %v2050 = vld [vmem:[%s7] sm:$0x1]
    %v2052 = vlaneseq
    %v2053 = vshrl.u32 %v2052, 7
    %v2054 = vsub.s32 0, %v2053
    %v2055 = vrot.slane %v2050, %v2054
    %v2057 = vmul.f32 %v2046, %v2055
    %v2058 = vmul.f32 %v2047, %v2055
    %v2059 = vmul.f32 %v2048, %v2055
    %v2060 = vmul.f32 %v2049, %v2055
    %v2061 = vld [vmem:[%s8] sm:$0x1]
    %v2063 = vlaneseq
    %v2064 = vshrl.u32 %v2063, 7
    %v2065 = vsub.s32 0, %v2064
    %v2066 = vrot.slane %v2061, %v2065
    %v2068 = vadd.f32 %v2057, %v2066
    %v2069 = vadd.f32 %v2058, %v2066
    %v2070 = vadd.f32 %v2059, %v2066
    %v2071 = vadd.f32 %v2060, %v2066
    %v2076 = vcombine.high %v2068, %v2068
    %v2077 = vcombine.high %v2069, %v2069
    %v2078 = vcombine.high %v2070, %v2070
    %v2079 = vcombine.high %v2071, %v2071
    %v2080 = vlaneseq
    %v2081 = vshrl.u32 %v2080, 7
    %v2082 = vsub.s32 0, %v2081
    %v2083 = vrot.slane %v2068, %v2082
    %v2084 = vlaneseq
    %v2085 = vshrl.u32 %v2084, 7
    %v2086 = vsub.s32 0, %v2085
    %v2087 = vrot.slane %v2070, %v2086
    %vm2088 = vcmask 1041409
    %v2089 = vsel %vm2088, %v2087, %v2083
    %v2091 = vlaneseq
    %v2092 = vshrl.u32 %v2091, 7
    %v2093 = vsub.s32 1, %v2092
    %v2094 = vrot.slane %v2068, %v2093
    %v2095 = vlaneseq
    %v2096 = vshrl.u32 %v2095, 7
    %v2097 = vsub.s32 1, %v2096
    %v2098 = vrot.slane %v2070, %v2097
    %v2099 = vsel %vm2088, %v2098, %v2094
    %2100 = vrot.lane.b32.xlu0 %v2099, 2
    %v2101 = vpop.permute.xlu0 %2100
    %v2103 = vlaneseq
    %v2104 = vshrl.u32 %v2103, 7
    %v2105 = vsub.s32 2, %v2104
    %v2106 = vrot.slane %v2068, %v2105
    %v2107 = vlaneseq
    %v2108 = vshrl.u32 %v2107, 7
    %v2109 = vsub.s32 2, %v2108
    %v2110 = vrot.slane %v2070, %v2109
    %v2111 = vsel %vm2088, %v2110, %v2106
    %2112 = vrot.lane.b32.xlu0 %v2111, 4
    %v2113 = vpop.permute.xlu0 %2112
    %v2115 = vlaneseq
    %v2116 = vshrl.u32 %v2115, 7
    %v2117 = vsub.s32 3, %v2116
    %v2118 = vrot.slane %v2068, %v2117
    %v2119 = vlaneseq
    %v2120 = vshrl.u32 %v2119, 7
    %v2121 = vsub.s32 3, %v2120
    %v2122 = vrot.slane %v2070, %v2121
    %v2123 = vsel %vm2088, %v2122, %v2118
    %2124 = vrot.lane.b32.xlu0 %v2123, 6
    %v2125 = vpop.permute.xlu0 %2124
    %v2127 = vlaneseq
    %v2128 = vshrl.u32 %v2127, 7
    %v2129 = vsub.s32 0, %v2128
    %v2130 = vrot.slane %v2076, %v2129
    %v2131 = vlaneseq
    %v2132 = vshrl.u32 %v2131, 7
    %v2133 = vsub.s32 0, %v2132
    %v2134 = vrot.slane %v2078, %v2133
    %v2135 = vsel %vm2088, %v2134, %v2130
    %2136 = vrot.lane.b32.xlu0 %v2135, 8
    %v2137 = vpop.permute.xlu0 %2136
    %v2139 = vlaneseq
    %v2140 = vshrl.u32 %v2139, 7
    %v2141 = vsub.s32 1, %v2140
    %v2142 = vrot.slane %v2076, %v2141
    %v2143 = vlaneseq
    %v2144 = vshrl.u32 %v2143, 7
    %v2145 = vsub.s32 1, %v2144
    %v2146 = vrot.slane %v2078, %v2145
    %v2147 = vsel %vm2088, %v2146, %v2142
    %2148 = vrot.lane.b32.xlu0 %v2147, 10
    %v2149 = vpop.permute.xlu0 %2148
    %v2151 = vlaneseq
    %v2152 = vshrl.u32 %v2151, 7
    %v2153 = vsub.s32 2, %v2152
    %v2154 = vrot.slane %v2076, %v2153
    %v2155 = vlaneseq
    %v2156 = vshrl.u32 %v2155, 7
    %v2157 = vsub.s32 2, %v2156
    %v2158 = vrot.slane %v2078, %v2157
    %v2159 = vsel %vm2088, %v2158, %v2154
    %2160 = vrot.lane.b32.xlu0 %v2159, 12
    %v2161 = vpop.permute.xlu0 %2160
    %v2163 = vlaneseq
    %v2164 = vshrl.u32 %v2163, 7
    %v2165 = vsub.s32 3, %v2164
    %v2166 = vrot.slane %v2076, %v2165
    %v2167 = vlaneseq
    %v2168 = vshrl.u32 %v2167, 7
    %v2169 = vsub.s32 3, %v2168
    %v2170 = vrot.slane %v2078, %v2169
    %v2171 = vsel %vm2088, %v2170, %v2166
    %2172 = vrot.lane.b32.xlu0 %v2171, 14
    %v2173 = vpop.permute.xlu0 %2172
    %v2175 = vlaneseq
    %v2176 = vshrl.u32 %v2175, 7
    %v2177 = vsub.s32 0, %v2176
    %v2178 = vrot.slane %v2069, %v2177
    %v2179 = vlaneseq
    %v2180 = vshrl.u32 %v2179, 7
    %v2181 = vsub.s32 0, %v2180
    %v2182 = vrot.slane %v2071, %v2181
    %v2183 = vsel %vm2088, %v2182, %v2178
    %2184 = vrot.lane.b32.xlu0 %v2183, 16
    %v2185 = vpop.permute.xlu0 %2184
    %v2187 = vlaneseq
    %v2188 = vshrl.u32 %v2187, 7
    %v2189 = vsub.s32 1, %v2188
    %v2190 = vrot.slane %v2069, %v2189
    %v2191 = vlaneseq
    %v2192 = vshrl.u32 %v2191, 7
    %v2193 = vsub.s32 1, %v2192
    %v2194 = vrot.slane %v2071, %v2193
    %v2195 = vsel %vm2088, %v2194, %v2190
    %2196 = vrot.lane.b32.xlu0 %v2195, 18
    %v2197 = vpop.permute.xlu0 %2196
    %v2199 = vlaneseq
    %v2200 = vshrl.u32 %v2199, 7
    %v2201 = vsub.s32 2, %v2200
    %v2202 = vrot.slane %v2069, %v2201
    %v2203 = vlaneseq
    %v2204 = vshrl.u32 %v2203, 7
    %v2205 = vsub.s32 2, %v2204
    %v2206 = vrot.slane %v2071, %v2205
    %v2207 = vsel %vm2088, %v2206, %v2202
    %2208 = vrot.lane.b32.xlu0 %v2207, 20
    %v2209 = vpop.permute.xlu0 %2208
    %v2211 = vlaneseq
    %v2212 = vshrl.u32 %v2211, 7
    %v2213 = vsub.s32 3, %v2212
    %v2214 = vrot.slane %v2069, %v2213
    %v2215 = vlaneseq
    %v2216 = vshrl.u32 %v2215, 7
    %v2217 = vsub.s32 3, %v2216
    %v2218 = vrot.slane %v2071, %v2217
    %v2219 = vsel %vm2088, %v2218, %v2214
    %2220 = vrot.lane.b32.xlu0 %v2219, 22
    %v2221 = vpop.permute.xlu0 %2220
    %v2223 = vlaneseq
    %v2224 = vshrl.u32 %v2223, 7
    %v2225 = vsub.s32 0, %v2224
    %v2226 = vrot.slane %v2077, %v2225
    %v2227 = vlaneseq
    %v2228 = vshrl.u32 %v2227, 7
    %v2229 = vsub.s32 0, %v2228
    %v2230 = vrot.slane %v2079, %v2229
    %v2231 = vsel %vm2088, %v2230, %v2226
    %2232 = vrot.lane.b32.xlu0 %v2231, 24
    %v2233 = vpop.permute.xlu0 %2232
    %v2235 = vlaneseq
    %v2236 = vshrl.u32 %v2235, 7
    %v2237 = vsub.s32 1, %v2236
    %v2238 = vrot.slane %v2077, %v2237
    %v2239 = vlaneseq
    %v2240 = vshrl.u32 %v2239, 7
    %v2241 = vsub.s32 1, %v2240
    %v2242 = vrot.slane %v2079, %v2241
    %v2243 = vsel %vm2088, %v2242, %v2238
    %2244 = vrot.lane.b32.xlu0 %v2243, 26
    %v2245 = vpop.permute.xlu0 %2244
    %v2247 = vlaneseq
    %v2248 = vshrl.u32 %v2247, 7
    %v2249 = vsub.s32 2, %v2248
    %v2250 = vrot.slane %v2077, %v2249
    %v2251 = vlaneseq
    %v2252 = vshrl.u32 %v2251, 7
    %v2253 = vsub.s32 2, %v2252
    %v2254 = vrot.slane %v2079, %v2253
    %v2255 = vsel %vm2088, %v2254, %v2250
    %2256 = vrot.lane.b32.xlu0 %v2255, 28
    %v2257 = vpop.permute.xlu0 %2256
    %v2259 = vlaneseq
    %v2260 = vshrl.u32 %v2259, 7
    %v2261 = vsub.s32 3, %v2260
    %v2262 = vrot.slane %v2077, %v2261
    %v2263 = vlaneseq
    %v2264 = vshrl.u32 %v2263, 7
    %v2265 = vsub.s32 3, %v2264
    %v2266 = vrot.slane %v2079, %v2265
    %v2267 = vsel %vm2088, %v2266, %v2262
    %2268 = vrot.lane.b32.xlu0 %v2267, 30
    %v2269 = vpop.permute.xlu0 %2268
    %v2271 = vsel %vm2004, %v2089, %v2101
    %v2272 = vsel %vm1275, %v2271, %v2113
    %vm2273 = vcmask 48128
    %v2274 = vsel %vm2273, %v2272, %v2125
    %v2275 = vsel %vm221, %v2274, %v2137
    %vm2276 = vcmask 80896
    %v2277 = vsel %vm2276, %v2275, %v2149
    %v2278 = vsel %vm1884, %v2277, %v2161
    %vm2279 = vcmask 113664
    %v2280 = vsel %vm2279, %v2278, %v2173
    %v2281 = vsel %vm963, %v2280, %v2185
    %vm2282 = vcmask 146432
    %v2283 = vsel %vm2282, %v2281, %v2197
    %v2284 = vsel %vm1893, %v2283, %v2209
    %vm2285 = vcmask 179200
    %v2286 = vsel %vm2285, %v2284, %v2221
    %v2287 = vsel %vm980, %v2286, %v2233
    %vm2288 = vcmask 211968
    %v2289 = vsel %vm2288, %v2287, %v2245
    %v2290 = vsel %vm1902, %v2289, %v2257
    %vm2291 = vcmask 244736
    %v2292 = vsel %vm2291, %v2290, %v2269
    %v2293 = vpack.c.bf16 %v2292, %v2292
    %v2294 = vld [vmem:[%s9] sm:$0xf]
    %v2295 = vld [vmem:[%s9 + $0x4] sm:$0xf]
    %v2296 = vld [vmem:[%s9 + $0x8] sm:$0xf]
    %v2297 = vld [vmem:[%s9 + $0xc] sm:$0xf]
    %v2298 = vld [vmem:[%s10] sm:$0x1]
    %v2300 = vlaneseq
    %v2301 = vshrl.u32 %v2300, 7
    %v2302 = vsub.s32 0, %v2301
    %v2303 = vrot.slane %v2298, %v2302
    %v2309 = vunpack.c.l.b16 %v2294
    %v2310 = vunpack.c.l.b16 %v2295
    %v2311 = vunpack.c.l.b16 %v2296
    %v2312 = vunpack.c.l.b16 %v2297
    %v2313 = vpack.c.b16 %v2310, %v2309
    %v2314 = vpack.c.b16 %v2312, %v2311
    %v2318 = vsel %vm997, %v2293, 0
    %2320 = vmatprep.subr.bf16.mxu0 0
    %2321 = vmatpush1.bf16.msra.mxu0 %v2313
    %2322 = vmatprep.subr.bf16.mxu0 0
    %2323 = vmatpush1.bf16.msra.mxu0 %v2314
    %2324 = vmatprep.subr.bf16.mxu0 0
    %2325 = vmatpush1.bf16.msra.mxu0 0
    %2326 = vmatprep.subr.bf16.mxu0 0
    %2327 = vmatpush1.bf16.msra.mxu0 0
    %2328 = vmatprep.subr.bf16.mxu0 0
    %2329 = vmatpush1.bf16.msra.mxu0 0
    %2330 = vmatprep.subr.bf16.mxu0 0
    %2331 = vmatpush1.bf16.msra.mxu0 0
    %2332 = vmatprep.subr.bf16.mxu0 0
    %2333 = vmatpush1.bf16.msra.mxu0 0
    %2334 = vmatprep.subr.bf16.mxu0 0
    %2335 = vmatpush1.bf16.msra.mxu0 0
    %2336 = vmatprep.subr.bf16.mxu0 0
    %2337 = vmatpush1.bf16.msra.mxu0 0
    %2338 = vmatprep.subr.bf16.mxu0 0
    %2339 = vmatpush1.bf16.msra.mxu0 0
    %2340 = vmatprep.subr.bf16.mxu0 0
    %2341 = vmatpush1.bf16.msra.mxu0 0
    %2342 = vmatprep.subr.bf16.mxu0 0
    %2343 = vmatpush1.bf16.msra.mxu0 0
    %2344 = vmatprep.subr.bf16.mxu0 0
    %2345 = vmatpush1.bf16.msra.mxu0 0
    %2346 = vmatprep.subr.bf16.mxu0 0
    %2347 = vmatpush1.bf16.msra.mxu0 0
    %2348 = vmatprep.subr.bf16.mxu0 0
    %2349 = vmatpush1.bf16.msra.mxu0 0
    %2350 = vmatprep.subr.bf16.mxu0 0
    %2351 = vmatpush1.bf16.msra.mxu0 0
    %2352 = vmatprep.mubr.bf16.mxu0 0
    %2353 = vmatmul.mubr.bf16.gmra.mrb[0].mxu0 %v2318
    %v2354 = vpop.f32.mrb[0].mxu0
    %v2355 = vadd.f32 %v2303, %v2354
    %v2356 = vpop.f32.mrb[0].mxu0
    %v2357 = vpop.f32.mrb[0].mxu0
    %v2358 = vpop.f32.mrb[0].mxu0
    %2359 = vdwg.mxu0
    %v2360 = vmax.f32 %v2355, 0.0
    %v2361 = vpack.c.bf16 %v2360, %v2360
    %v2362 = vld [vmem:[%s11] sm:$0xf]
    %v2363 = vld [vmem:[%s11 + $0x4] sm:$0xf]
    %v2364 = vld [vmem:[%s11 + $0x8] sm:$0xf]
    %v2365 = vld [vmem:[%s11 + $0xc] sm:$0xf]
    %v2366 = vld [vmem:[%s11 + $0x10] sm:$0xf]
    %v2367 = vld [vmem:[%s11 + $0x14] sm:$0xf]
    %v2368 = vld [vmem:[%s11 + $0x18] sm:$0xf]
    %v2369 = vld [vmem:[%s11 + $0x1c] sm:$0xf]
    %v2370 = vld [vmem:[%s11 + $0x20] sm:$0xf]
    %v2371 = vld [vmem:[%s11 + $0x24] sm:$0xf]
    %v2372 = vld [vmem:[%s11 + $0x28] sm:$0xf]
    %v2373 = vld [vmem:[%s11 + $0x2c] sm:$0xf]
    %v2374 = vld [vmem:[%s11 + $0x30] sm:$0xf]
    %v2375 = vld [vmem:[%s11 + $0x34] sm:$0xf]
    %v2376 = vld [vmem:[%s11 + $0x38] sm:$0xf]
    %v2377 = vld [vmem:[%s11 + $0x3c] sm:$0xf]
    %v2378 = vld [vmem:[%s12] sm:$0x1]
    %v2380 = vlaneseq
    %v2381 = vshrl.u32 %v2380, 7
    %v2382 = vsub.s32 0, %v2381
    %v2383 = vrot.slane %v2378, %v2382
    %v2401 = vunpack.c.l.b16 %v2362
    %v2402 = vunpack.c.l.b16 %v2363
    %v2403 = vunpack.c.l.b16 %v2364
    %v2404 = vunpack.c.l.b16 %v2365
    %v2405 = vunpack.c.l.b16 %v2366
    %v2406 = vunpack.c.l.b16 %v2367
    %v2407 = vunpack.c.l.b16 %v2368
    %v2408 = vunpack.c.l.b16 %v2369
    %v2409 = vunpack.c.l.b16 %v2370
    %v2410 = vunpack.c.l.b16 %v2371
    %v2411 = vunpack.c.l.b16 %v2372
    %v2412 = vunpack.c.l.b16 %v2373
    %v2413 = vunpack.c.l.b16 %v2374
    %v2414 = vunpack.c.l.b16 %v2375
    %v2415 = vunpack.c.l.b16 %v2376
    %v2416 = vunpack.c.l.b16 %v2377
    %v2417 = vpack.c.b16 %v2402, %v2401
    %v2418 = vpack.c.b16 %v2404, %v2403
    %v2419 = vpack.c.b16 %v2406, %v2405
    %v2420 = vpack.c.b16 %v2408, %v2407
    %v2421 = vpack.c.b16 %v2410, %v2409
    %v2422 = vpack.c.b16 %v2412, %v2411
    %v2423 = vpack.c.b16 %v2414, %v2413
    %v2424 = vpack.c.b16 %v2416, %v2415
    %2433 = vmatprep.subr.bf16.mxu0 0
    %2434 = vmatpush1.bf16.msra.mxu0 %v2417
    %2435 = vmatprep.subr.bf16.mxu0 0
    %2436 = vmatpush1.bf16.msra.mxu0 %v2418
    %2437 = vmatprep.subr.bf16.mxu0 0
    %2438 = vmatpush1.bf16.msra.mxu0 %v2419
    %2439 = vmatprep.subr.bf16.mxu0 0
    %2440 = vmatpush1.bf16.msra.mxu0 %v2420
    %2441 = vmatprep.subr.bf16.mxu0 0
    %2442 = vmatpush1.bf16.msra.mxu0 %v2421
    %2443 = vmatprep.subr.bf16.mxu0 0
    %2444 = vmatpush1.bf16.msra.mxu0 %v2422
    %2445 = vmatprep.subr.bf16.mxu0 0
    %2446 = vmatpush1.bf16.msra.mxu0 %v2423
    %2447 = vmatprep.subr.bf16.mxu0 0
    %2448 = vmatpush1.bf16.msra.mxu0 %v2424
    %2449 = vmatprep.subr.bf16.mxu0 0
    %2450 = vmatpush1.bf16.msra.mxu0 0
    %2451 = vmatprep.subr.bf16.mxu0 0
    %2452 = vmatpush1.bf16.msra.mxu0 0
    %2453 = vmatprep.subr.bf16.mxu0 0
    %2454 = vmatpush1.bf16.msra.mxu0 0
    %2455 = vmatprep.subr.bf16.mxu0 0
    %2456 = vmatpush1.bf16.msra.mxu0 0
    %2457 = vmatprep.subr.bf16.mxu0 0
    %2458 = vmatpush1.bf16.msra.mxu0 0
    %2459 = vmatprep.subr.bf16.mxu0 0
    %2460 = vmatpush1.bf16.msra.mxu0 0
    %2461 = vmatprep.subr.bf16.mxu0 0
    %2462 = vmatpush1.bf16.msra.mxu0 0
    %2463 = vmatprep.subr.bf16.mxu0 0
    %2464 = vmatpush1.bf16.msra.mxu0 0
    %2465 = vmatprep.mubr.bf16.mxu0 0
    %2466 = vmatmul.mubr.bf16.gmra.mrb[0].mxu0 %v2361
    %v2467 = vpop.f32.mrb[0].mxu0
    %v2468 = vadd.f32 %v2383, %v2467
    %v2469 = vpop.f32.mrb[0].mxu0
    %v2470 = vpop.f32.mrb[0].mxu0
    %v2471 = vpop.f32.mrb[0].mxu0
    %2472 = vdwg.mxu0
    %2473 = vst [vmem:[#allocation5] sm:$0x3] %v2468
    // Predicated region
    $region54: #{encoder_forward.1} parent=1 // pred_check
      _
    $region55: #{encoder_forward.1} parent=1 // pred_check_branch
      %2475 = sbr.rel (0) target = $region57
    $region56: #{encoder_forward.1} parent=1 // pred_region
      %s2477 = ssub.s32 32, 32
      %2478 = vsyncadd [#allocation6], %s2477
      %s2480 = sshll.u32 [#allocation5], 4
      %s2481 = int_to_ptr.vmem [resolvable:$true] %s2480
      %2483 = dma.vmem_to_hbm [thread:$0]  %s2481, 32, %s13, [#allocation6]
    $region57: #{encoder_forward.1} parent=1 // pred_fallthru
      _
    // Predicated region
    $region58: #{encoder_forward.1} parent=1 // pred_check
      _
    $region59: #{encoder_forward.1} parent=1 // pred_check_branch
      %2485 = sbr.rel (0) target = $region61
    $region60: #{encoder_forward.1} parent=1 // pred_region
      %2486 = dma.done [#allocation6], 32
    $region61: #{encoder_forward.1} parent=1 // pred_fallthru
      _
    %2487 = vsyncpa [#allocation6], 1

</llo_original>
